<compile_context>
chip_gen: v7x
topology: tpu7x:2x2x1
jax: 0.10.0
libtpu: 0.0.40
codegen_flags: <defaults>
</compile_context>

<pallas_src>
import jax
import jax.numpy as jnp
from jax import lax
from jax.experimental import pallas as pl
from jax.experimental.pallas import tpu as pltpu

# ---------------- configuration (small, consistent with the module) --------
B = 2            # batch
N = 8            # num_patches == sequence length
DIM = 32         # hidden dim
HEADS = 4        # num_attention_heads
HEAD_DIM = DIM // HEADS          # attention_head_size = 8
ALL_HEAD = HEADS * HEAD_DIM      # all_head_size = 32

SCALED_LAYER_SCALE = 1.0                 # ScaledLayer scale (==1.0, folded out)
ATTN_SCALE = float(HEAD_DIM) ** (-1.0)   # standparam=False -> 1/head_size
SCALE_ATTN_WEIGHTS = 1.0                 # use_relu=False (==1.0, folded out)

# dot_general dimension numbers
_A_BT = (((1,), (1,)), ((), ()))   # a @ b.T   (contract last with last)
_A_B = (((1,), (0,)), ((), ()))    # a @ b     (contract last with first)


def _attention_kernel(x_ref, wqkv_ref, o_ref):
    """Whole problem in one invocation.

    x_ref    : (B, N, DIM)            hidden states
    wqkv_ref : (3*ALL_HEAD, DIM)      rows = [Wq ; Wk ; Wv]
    o_ref    : (B, N, ALL_HEAD)       lane-dense context output
    """
    x = x_ref[...].reshape(B * N, DIM)          # (16, 32)
    w = wqkv_ref[...]                           # (96, 32)

    # fused QKV projection: one (16,32)x(32,96) MXU push, no transposes
    qkv = lax.dot_general(x, w, _A_BT,
                          preferred_element_type=jnp.float32)   # (16, 96)

    q = qkv[:, 0:ALL_HEAD] * ATTN_SCALE          # attn scale folded into q
    k = qkv[:, ALL_HEAD:2 * ALL_HEAD]
    v = qkv[:, 2 * ALL_HEAD:3 * ALL_HEAD]

    for b in range(B):                           # unrolled (B=2)
        r0 = b * N
        ctx_cols = []
        for h in range(HEADS):                   # unrolled (HEADS=4)
            c0 = h * HEAD_DIM
            qh = q[r0:r0 + N, c0:c0 + HEAD_DIM]  # (N, d)
            kh = k[r0:r0 + N, c0:c0 + HEAD_DIM]
            vh = v[r0:r0 + N, c0:c0 + HEAD_DIM]

            # scores = qh @ kh.T (no explicit transpose)
            s = lax.dot_general(qh, kh, _A_BT,
                                preferred_element_type=jnp.float32)  # (N, N)

            # numerically stable softmax; reciprocal on the EUP slot
            m = jnp.max(s, axis=-1, keepdims=True)
            e = jnp.exp(s - m)
            denom = jnp.sum(e, axis=-1, keepdims=True)
            p = e * pl.reciprocal(denom, approx=True)

            # context for this head: (N, d)
            ctx_cols.append(lax.dot_general(p, vh, _A_B,
                                            preferred_element_type=jnp.float32))

        # pack heads along the last (lane) dim -> lane-dense (N, ALL_HEAD) store
        o_ref[b] = jnp.concatenate(ctx_cols, axis=-1).astype(o_ref.dtype)


def my_self_attention(hidden_states, w_query, w_key, w_value):
    """hidden_states: [B, N, DIM]; weights: [ALL_HEAD, DIM]. Returns [B, N, ALL_HEAD]."""
    b, n, d = hidden_states.shape
    assert (b, n, d) == (B, N, DIM)

    # concatenate the three Linear weights once (glue only)
    w_qkv = jnp.concatenate([w_query, w_key, w_value], axis=0)   # (96, 32)

    return pl.pallas_call(
        _attention_kernel,
        out_shape=jax.ShapeDtypeStruct((B, N, ALL_HEAD), jnp.float32),
        grid_spec=pltpu.PrefetchScalarGridSpec(
            num_scalar_prefetch=0,
            grid=(1,),                       # single invocation, whole problem
            in_specs=[
                pl.BlockSpec((B, N, DIM), lambda i: (0, 0, 0)),
                pl.BlockSpec((3 * ALL_HEAD, DIM), lambda i: (0, 0)),
            ],
            out_specs=pl.BlockSpec((B, N, ALL_HEAD), lambda i: (0, 0, 0)),
        ),
        compiler_params=pltpu.CompilerParams(
            dimension_semantics=("arbitrary",)),
    )(hidden_states, w_qkv)


def _reference(hidden_states, w_query, w_key, w_value):
    """Pure-JAX reference of the PyTorch forward (module defaults)."""
    def proj(x, w):
        return (x @ w.T) * SCALED_LAYER_SCALE

    def split_heads(t):  # [B, N, ALL_HEAD] -> [B, H, N, d]
        return t.reshape(B, N, HEADS, HEAD_DIM).transpose(0, 2, 1, 3)

    q = split_heads(proj(hidden_states, w_query))
    k = split_heads(proj(hidden_states, w_key))
    v = split_heads(proj(hidden_states, w_value))
    scores = jnp.einsum("bhnd,bhmd->bhnm", q, k) * ATTN_SCALE
    probs = jax.nn.softmax(scores, axis=-1) * SCALE_ATTN_WEIGHTS
    ctx = jnp.einsum("bhnm,bhmd->bhnd", probs, v)
    return ctx.transpose(0, 2, 1, 3).reshape(B, N, ALL_HEAD)


if __name__ == "__main__":
    key = jax.random.PRNGKey(0)
    k_x, k_q, k_k, k_v = jax.random.split(key, 4)

    hidden_states = jax.random.normal(k_x, (B, N, DIM), dtype=jnp.float32)
    # nn.Linear(dim, all_head_size, bias=False) weights: [out, in]
    w_query = jax.random.normal(k_q, (ALL_HEAD, DIM), dtype=jnp.float32) * 0.02
    w_key = jax.random.normal(k_k, (ALL_HEAD, DIM), dtype=jnp.float32) * 0.02
    w_value = jax.random.normal(k_v, (ALL_HEAD, DIM), dtype=jnp.float32) * 0.02

    out = my_self_attention(hidden_states, w_query, w_key, w_value)
    out = jax.block_until_ready(out)

    ref = _reference(hidden_states, w_query, w_key, w_value)
    assert out.shape == (B, N, ALL_HEAD)
    # tolerance slightly relaxed vs 1e-5 because of pl.reciprocal(approx=True)
    assert jnp.allclose(out, ref, atol=2e-3, rtol=2e-3)

    print("KERNEL_OK")
</pallas_src>

<mosaic_0001>
module attributes {stable_mosaic.version = 11 : i64} {
  func.func @_attention_kernel(%arg0: i32, %arg1: memref<2x8x32xf32, #tpu.memory_space<vmem>>, %arg2: memref<96x32xf32, #tpu.memory_space<vmem>>, %arg3: memref<2x8x32xf32, #tpu.memory_space<vmem>>) attributes {dimension_semantics = [#tpu.dimension_semantics<arbitrary>], iteration_bounds = array<i64: 1>, scalar_prefetch = 0 : i64, scratch_operands = 0 : i64, tpu.core_type = #tpu.core_type<tc>, window_params = [{pipeline_mode = #tpu.pipeline_mode<synchronous>, transform_indices = @transform_0, window_bounds = array<i64: 2, 8, 32>}, {pipeline_mode = #tpu.pipeline_mode<synchronous>, transform_indices = @transform_1, window_bounds = array<i64: 96, 32>}, {pipeline_mode = #tpu.pipeline_mode<synchronous>, transform_indices = @transform_2, window_bounds = array<i64: 2, 8, 32>}]} {
    %c0 = arith.constant 0 : index
    %c0_0 = arith.constant 0 : index
    %c0_1 = arith.constant 0 : index
    %0 = vector.load %arg1[%c0, %c0_0, %c0_1] : memref<2x8x32xf32, #tpu.memory_space<vmem>>, vector<2x8x32xf32>
    %1 = vector.shape_cast %0 : vector<2x8x32xf32> to vector<16x32xf32>
    %c0_2 = arith.constant 0 : index
    %c0_3 = arith.constant 0 : index
    %2 = vector.load %arg2[%c0_2, %c0_3] : memref<96x32xf32, #tpu.memory_space<vmem>>, vector<96x32xf32>
    %cst = arith.constant dense<0.000000e+00> : vector<16x96xf32>
    %3 = tpu.matmul %1, %2, %cst {dimension_numbers = #tpu.dot_dimension_numbers<[1], [1], [0], [0], [0, 0, 1, 0], [], []>} : vector<16x32xf32>, vector<96x32xf32>, vector<16x96xf32> -> vector<16x96xf32>
    %4 = vector.extract_strided_slice %3 {offsets = [0, 0], sizes = [16, 32], strides = [1, 1]} : vector<16x96xf32> to vector<16x32xf32>
    %cst_4 = arith.constant 1.250000e-01 : f32
    %5 = vector.broadcast %cst_4 : f32 to vector<16x32xf32>
    %6 = arith.mulf %4, %5 : vector<16x32xf32>
    %7 = vector.extract_strided_slice %3 {offsets = [0, 32], sizes = [16, 32], strides = [1, 1]} : vector<16x96xf32> to vector<16x32xf32>
    %8 = vector.extract_strided_slice %3 {offsets = [0, 64], sizes = [16, 32], strides = [1, 1]} : vector<16x96xf32> to vector<16x32xf32>
    %9 = vector.extract_strided_slice %6 {offsets = [0, 0], sizes = [8, 8], strides = [1, 1]} : vector<16x32xf32> to vector<8x8xf32>
    %10 = vector.extract_strided_slice %7 {offsets = [0, 0], sizes = [8, 8], strides = [1, 1]} : vector<16x32xf32> to vector<8x8xf32>
    %11 = vector.extract_strided_slice %8 {offsets = [0, 0], sizes = [8, 8], strides = [1, 1]} : vector<16x32xf32> to vector<8x8xf32>
    %cst_5 = arith.constant dense<0.000000e+00> : vector<8x8xf32>
    %12 = tpu.matmul %9, %10, %cst_5 {dimension_numbers = #tpu.dot_dimension_numbers<[1], [1], [0], [0], [0, 0, 1, 0], [], []>} : vector<8x8xf32>, vector<8x8xf32>, vector<8x8xf32> -> vector<8x8xf32>
    %cst_6 = arith.constant dense<0xFF800000> : vector<8xf32>
    %13 = vector.multi_reduction <maximumf>, %12, %cst_6 [1] : vector<8x8xf32> to vector<8xf32>
    %14 = vector.shape_cast %13 : vector<8xf32> to vector<8x1xf32>
    %15 = vector.broadcast %14 : vector<8x1xf32> to vector<8x8xf32>
    %16 = arith.subf %12, %15 : vector<8x8xf32>
    %17 = math.exp %16 : vector<8x8xf32>
    %cst_7 = arith.constant dense<0.000000e+00> : vector<8xf32>
    %18 = vector.multi_reduction <add>, %17, %cst_7 [1] : vector<8x8xf32> to vector<8xf32>
    %19 = vector.shape_cast %18 : vector<8xf32> to vector<8x1xf32>
    %20 = tpu.reciprocal %19 {approx = true} : vector<8x1xf32> -> vector<8x1xf32>
    %21 = vector.broadcast %20 : vector<8x1xf32> to vector<8x8xf32>
    %22 = arith.mulf %17, %21 : vector<8x8xf32>
    %cst_8 = arith.constant dense<0.000000e+00> : vector<8x8xf32>
    %23 = tpu.matmul %22, %11, %cst_8 {dimension_numbers = #tpu.dot_dimension_numbers<[1], [0], [0], [1], [0, 0, 1, 1], [], []>} : vector<8x8xf32>, vector<8x8xf32>, vector<8x8xf32> -> vector<8x8xf32>
    %24 = vector.extract_strided_slice %6 {offsets = [0, 8], sizes = [8, 8], strides = [1, 1]} : vector<16x32xf32> to vector<8x8xf32>
    %25 = vector.extract_strided_slice %7 {offsets = [0, 8], sizes = [8, 8], strides = [1, 1]} : vector<16x32xf32> to vector<8x8xf32>
    %26 = vector.extract_strided_slice %8 {offsets = [0, 8], sizes = [8, 8], strides = [1, 1]} : vector<16x32xf32> to vector<8x8xf32>
    %cst_9 = arith.constant dense<0.000000e+00> : vector<8x8xf32>
    %27 = tpu.matmul %24, %25, %cst_9 {dimension_numbers = #tpu.dot_dimension_numbers<[1], [1], [0], [0], [0, 0, 1, 0], [], []>} : vector<8x8xf32>, vector<8x8xf32>, vector<8x8xf32> -> vector<8x8xf32>
    %cst_10 = arith.constant dense<0xFF800000> : vector<8xf32>
    %28 = vector.multi_reduction <maximumf>, %27, %cst_10 [1] : vector<8x8xf32> to vector<8xf32>
    %29 = vector.shape_cast %28 : vector<8xf32> to vector<8x1xf32>
    %30 = vector.broadcast %29 : vector<8x1xf32> to vector<8x8xf32>
    %31 = arith.subf %27, %30 : vector<8x8xf32>
    %32 = math.exp %31 : vector<8x8xf32>
    %cst_11 = arith.constant dense<0.000000e+00> : vector<8xf32>
    %33 = vector.multi_reduction <add>, %32, %cst_11 [1] : vector<8x8xf32> to vector<8xf32>
    %34 = vector.shape_cast %33 : vector<8xf32> to vector<8x1xf32>
    %35 = tpu.reciprocal %34 {approx = true} : vector<8x1xf32> -> vector<8x1xf32>
    %36 = vector.broadcast %35 : vector<8x1xf32> to vector<8x8xf32>
    %37 = arith.mulf %32, %36 : vector<8x8xf32>
    %cst_12 = arith.constant dense<0.000000e+00> : vector<8x8xf32>
    %38 = tpu.matmul %37, %26, %cst_12 {dimension_numbers = #tpu.dot_dimension_numbers<[1], [0], [0], [1], [0, 0, 1, 1], [], []>} : vector<8x8xf32>, vector<8x8xf32>, vector<8x8xf32> -> vector<8x8xf32>
    %39 = vector.extract_strided_slice %6 {offsets = [0, 16], sizes = [8, 8], strides = [1, 1]} : vector<16x32xf32> to vector<8x8xf32>
    %40 = vector.extract_strided_slice %7 {offsets = [0, 16], sizes = [8, 8], strides = [1, 1]} : vector<16x32xf32> to vector<8x8xf32>
    %41 = vector.extract_strided_slice %8 {offsets = [0, 16], sizes = [8, 8], strides = [1, 1]} : vector<16x32xf32> to vector<8x8xf32>
    %cst_13 = arith.constant dense<0.000000e+00> : vector<8x8xf32>
    %42 = tpu.matmul %39, %40, %cst_13 {dimension_numbers = #tpu.dot_dimension_numbers<[1], [1], [0], [0], [0, 0, 1, 0], [], []>} : vector<8x8xf32>, vector<8x8xf32>, vector<8x8xf32> -> vector<8x8xf32>
    %cst_14 = arith.constant dense<0xFF800000> : vector<8xf32>
    %43 = vector.multi_reduction <maximumf>, %42, %cst_14 [1] : vector<8x8xf32> to vector<8xf32>
    %44 = vector.shape_cast %43 : vector<8xf32> to vector<8x1xf32>
    %45 = vector.broadcast %44 : vector<8x1xf32> to vector<8x8xf32>
    %46 = arith.subf %42, %45 : vector<8x8xf32>
    %47 = math.exp %46 : vector<8x8xf32>
    %cst_15 = arith.constant dense<0.000000e+00> : vector<8xf32>
    %48 = vector.multi_reduction <add>, %47, %cst_15 [1] : vector<8x8xf32> to vector<8xf32>
    %49 = vector.shape_cast %48 : vector<8xf32> to vector<8x1xf32>
    %50 = tpu.reciprocal %49 {approx = true} : vector<8x1xf32> -> vector<8x1xf32>
    %51 = vector.broadcast %50 : vector<8x1xf32> to vector<8x8xf32>
    %52 = arith.mulf %47, %51 : vector<8x8xf32>
    %cst_16 = arith.constant dense<0.000000e+00> : vector<8x8xf32>
    %53 = tpu.matmul %52, %41, %cst_16 {dimension_numbers = #tpu.dot_dimension_numbers<[1], [0], [0], [1], [0, 0, 1, 1], [], []>} : vector<8x8xf32>, vector<8x8xf32>, vector<8x8xf32> -> vector<8x8xf32>
    %54 = vector.extract_strided_slice %6 {offsets = [0, 24], sizes = [8, 8], strides = [1, 1]} : vector<16x32xf32> to vector<8x8xf32>
    %55 = vector.extract_strided_slice %7 {offsets = [0, 24], sizes = [8, 8], strides = [1, 1]} : vector<16x32xf32> to vector<8x8xf32>
    %56 = vector.extract_strided_slice %8 {offsets = [0, 24], sizes = [8, 8], strides = [1, 1]} : vector<16x32xf32> to vector<8x8xf32>
    %cst_17 = arith.constant dense<0.000000e+00> : vector<8x8xf32>
    %57 = tpu.matmul %54, %55, %cst_17 {dimension_numbers = #tpu.dot_dimension_numbers<[1], [1], [0], [0], [0, 0, 1, 0], [], []>} : vector<8x8xf32>, vector<8x8xf32>, vector<8x8xf32> -> vector<8x8xf32>
    %cst_18 = arith.constant dense<0xFF800000> : vector<8xf32>
    %58 = vector.multi_reduction <maximumf>, %57, %cst_18 [1] : vector<8x8xf32> to vector<8xf32>
    %59 = vector.shape_cast %58 : vector<8xf32> to vector<8x1xf32>
    %60 = vector.broadcast %59 : vector<8x1xf32> to vector<8x8xf32>
    %61 = arith.subf %57, %60 : vector<8x8xf32>
    %62 = math.exp %61 : vector<8x8xf32>
    %cst_19 = arith.constant dense<0.000000e+00> : vector<8xf32>
    %63 = vector.multi_reduction <add>, %62, %cst_19 [1] : vector<8x8xf32> to vector<8xf32>
    %64 = vector.shape_cast %63 : vector<8xf32> to vector<8x1xf32>
    %65 = tpu.reciprocal %64 {approx = true} : vector<8x1xf32> -> vector<8x1xf32>
    %66 = vector.broadcast %65 : vector<8x1xf32> to vector<8x8xf32>
    %67 = arith.mulf %62, %66 : vector<8x8xf32>
    %cst_20 = arith.constant dense<0.000000e+00> : vector<8x8xf32>
    %68 = tpu.matmul %67, %56, %cst_20 {dimension_numbers = #tpu.dot_dimension_numbers<[1], [0], [0], [1], [0, 0, 1, 1], [], []>} : vector<8x8xf32>, vector<8x8xf32>, vector<8x8xf32> -> vector<8x8xf32>
    %69 = tpu.concatenate %23, %38, %53, %68 in 1 : vector<8x8xf32>, vector<8x8xf32>, vector<8x8xf32>, vector<8x8xf32> -> vector<8x32xf32>
    %c0_21 = arith.constant 0 : index
    %c0_22 = arith.constant 0 : index
    %c0_23 = arith.constant 0 : index
    %70 = vector.load %arg3[%c0_21, %c0_22, %c0_23] : memref<2x8x32xf32, #tpu.memory_space<vmem>>, vector<1x8x32xf32>
    %71 = vector.shape_cast %70 : vector<1x8x32xf32> to vector<8x32xf32>
    %72 = vector.shape_cast %69 : vector<8x32xf32> to vector<1x8x32xf32>
    tpu.vector_store %arg3[%c0_21, %c0_22, %c0_23], %72 {strides = array<i32>} : memref<2x8x32xf32, #tpu.memory_space<vmem>>, vector<1x8x32xf32>,
    %73 = vector.extract_strided_slice %6 {offsets = [8, 0], sizes = [8, 8], strides = [1, 1]} : vector<16x32xf32> to vector<8x8xf32>
    %74 = vector.extract_strided_slice %7 {offsets = [8, 0], sizes = [8, 8], strides = [1, 1]} : vector<16x32xf32> to vector<8x8xf32>
    %75 = vector.extract_strided_slice %8 {offsets = [8, 0], sizes = [8, 8], strides = [1, 1]} : vector<16x32xf32> to vector<8x8xf32>
    %cst_24 = arith.constant dense<0.000000e+00> : vector<8x8xf32>
    %76 = tpu.matmul %73, %74, %cst_24 {dimension_numbers = #tpu.dot_dimension_numbers<[1], [1], [0], [0], [0, 0, 1, 0], [], []>} : vector<8x8xf32>, vector<8x8xf32>, vector<8x8xf32> -> vector<8x8xf32>
    %cst_25 = arith.constant dense<0xFF800000> : vector<8xf32>
    %77 = vector.multi_reduction <maximumf>, %76, %cst_25 [1] : vector<8x8xf32> to vector<8xf32>
    %78 = vector.shape_cast %77 : vector<8xf32> to vector<8x1xf32>
    %79 = vector.broadcast %78 : vector<8x1xf32> to vector<8x8xf32>
    %80 = arith.subf %76, %79 : vector<8x8xf32>
    %81 = math.exp %80 : vector<8x8xf32>
    %cst_26 = arith.constant dense<0.000000e+00> : vector<8xf32>
    %82 = vector.multi_reduction <add>, %81, %cst_26 [1] : vector<8x8xf32> to vector<8xf32>
    %83 = vector.shape_cast %82 : vector<8xf32> to vector<8x1xf32>
    %84 = tpu.reciprocal %83 {approx = true} : vector<8x1xf32> -> vector<8x1xf32>
    %85 = vector.broadcast %84 : vector<8x1xf32> to vector<8x8xf32>
    %86 = arith.mulf %81, %85 : vector<8x8xf32>
    %cst_27 = arith.constant dense<0.000000e+00> : vector<8x8xf32>
    %87 = tpu.matmul %86, %75, %cst_27 {dimension_numbers = #tpu.dot_dimension_numbers<[1], [0], [0], [1], [0, 0, 1, 1], [], []>} : vector<8x8xf32>, vector<8x8xf32>, vector<8x8xf32> -> vector<8x8xf32>
    %88 = vector.extract_strided_slice %6 {offsets = [8, 8], sizes = [8, 8], strides = [1, 1]} : vector<16x32xf32> to vector<8x8xf32>
    %89 = vector.extract_strided_slice %7 {offsets = [8, 8], sizes = [8, 8], strides = [1, 1]} : vector<16x32xf32> to vector<8x8xf32>
    %90 = vector.extract_strided_slice %8 {offsets = [8, 8], sizes = [8, 8], strides = [1, 1]} : vector<16x32xf32> to vector<8x8xf32>
    %cst_28 = arith.constant dense<0.000000e+00> : vector<8x8xf32>
    %91 = tpu.matmul %88, %89, %cst_28 {dimension_numbers = #tpu.dot_dimension_numbers<[1], [1], [0], [0], [0, 0, 1, 0], [], []>} : vector<8x8xf32>, vector<8x8xf32>, vector<8x8xf32> -> vector<8x8xf32>
    %cst_29 = arith.constant dense<0xFF800000> : vector<8xf32>
    %92 = vector.multi_reduction <maximumf>, %91, %cst_29 [1] : vector<8x8xf32> to vector<8xf32>
    %93 = vector.shape_cast %92 : vector<8xf32> to vector<8x1xf32>
    %94 = vector.broadcast %93 : vector<8x1xf32> to vector<8x8xf32>
    %95 = arith.subf %91, %94 : vector<8x8xf32>
    %96 = math.exp %95 : vector<8x8xf32>
    %cst_30 = arith.constant dense<0.000000e+00> : vector<8xf32>
    %97 = vector.multi_reduction <add>, %96, %cst_30 [1] : vector<8x8xf32> to vector<8xf32>
    %98 = vector.shape_cast %97 : vector<8xf32> to vector<8x1xf32>
    %99 = tpu.reciprocal %98 {approx = true} : vector<8x1xf32> -> vector<8x1xf32>
    %100 = vector.broadcast %99 : vector<8x1xf32> to vector<8x8xf32>
    %101 = arith.mulf %96, %100 : vector<8x8xf32>
    %cst_31 = arith.constant dense<0.000000e+00> : vector<8x8xf32>
    %102 = tpu.matmul %101, %90, %cst_31 {dimension_numbers = #tpu.dot_dimension_numbers<[1], [0], [0], [1], [0, 0, 1, 1], [], []>} : vector<8x8xf32>, vector<8x8xf32>, vector<8x8xf32> -> vector<8x8xf32>
    %103 = vector.extract_strided_slice %6 {offsets = [8, 16], sizes = [8, 8], strides = [1, 1]} : vector<16x32xf32> to vector<8x8xf32>
    %104 = vector.extract_strided_slice %7 {offsets = [8, 16], sizes = [8, 8], strides = [1, 1]} : vector<16x32xf32> to vector<8x8xf32>
    %105 = vector.extract_strided_slice %8 {offsets = [8, 16], sizes = [8, 8], strides = [1, 1]} : vector<16x32xf32> to vector<8x8xf32>
    %cst_32 = arith.constant dense<0.000000e+00> : vector<8x8xf32>
    %106 = tpu.matmul %103, %104, %cst_32 {dimension_numbers = #tpu.dot_dimension_numbers<[1], [1], [0], [0], [0, 0, 1, 0], [], []>} : vector<8x8xf32>, vector<8x8xf32>, vector<8x8xf32> -> vector<8x8xf32>
    %cst_33 = arith.constant dense<0xFF800000> : vector<8xf32>
    %107 = vector.multi_reduction <maximumf>, %106, %cst_33 [1] : vector<8x8xf32> to vector<8xf32>
    %108 = vector.shape_cast %107 : vector<8xf32> to vector<8x1xf32>
    %109 = vector.broadcast %108 : vector<8x1xf32> to vector<8x8xf32>
    %110 = arith.subf %106, %109 : vector<8x8xf32>
    %111 = math.exp %110 : vector<8x8xf32>
    %cst_34 = arith.constant dense<0.000000e+00> : vector<8xf32>
    %112 = vector.multi_reduction <add>, %111, %cst_34 [1] : vector<8x8xf32> to vector<8xf32>
    %113 = vector.shape_cast %112 : vector<8xf32> to vector<8x1xf32>
    %114 = tpu.reciprocal %113 {approx = true} : vector<8x1xf32> -> vector<8x1xf32>
    %115 = vector.broadcast %114 : vector<8x1xf32> to vector<8x8xf32>
    %116 = arith.mulf %111, %115 : vector<8x8xf32>
    %cst_35 = arith.constant dense<0.000000e+00> : vector<8x8xf32>
    %117 = tpu.matmul %116, %105, %cst_35 {dimension_numbers = #tpu.dot_dimension_numbers<[1], [0], [0], [1], [0, 0, 1, 1], [], []>} : vector<8x8xf32>, vector<8x8xf32>, vector<8x8xf32> -> vector<8x8xf32>
    %118 = vector.extract_strided_slice %6 {offsets = [8, 24], sizes = [8, 8], strides = [1, 1]} : vector<16x32xf32> to vector<8x8xf32>
    %119 = vector.extract_strided_slice %7 {offsets = [8, 24], sizes = [8, 8], strides = [1, 1]} : vector<16x32xf32> to vector<8x8xf32>
    %120 = vector.extract_strided_slice %8 {offsets = [8, 24], sizes = [8, 8], strides = [1, 1]} : vector<16x32xf32> to vector<8x8xf32>
    %cst_36 = arith.constant dense<0.000000e+00> : vector<8x8xf32>
    %121 = tpu.matmul %118, %119, %cst_36 {dimension_numbers = #tpu.dot_dimension_numbers<[1], [1], [0], [0], [0, 0, 1, 0], [], []>} : vector<8x8xf32>, vector<8x8xf32>, vector<8x8xf32> -> vector<8x8xf32>
    %cst_37 = arith.constant dense<0xFF800000> : vector<8xf32>
    %122 = vector.multi_reduction <maximumf>, %121, %cst_37 [1] : vector<8x8xf32> to vector<8xf32>
    %123 = vector.shape_cast %122 : vector<8xf32> to vector<8x1xf32>
    %124 = vector.broadcast %123 : vector<8x1xf32> to vector<8x8xf32>
    %125 = arith.subf %121, %124 : vector<8x8xf32>
    %126 = math.exp %125 : vector<8x8xf32>
    %cst_38 = arith.constant dense<0.000000e+00> : vector<8xf32>
    %127 = vector.multi_reduction <add>, %126, %cst_38 [1] : vector<8x8xf32> to vector<8xf32>
    %128 = vector.shape_cast %127 : vector<8xf32> to vector<8x1xf32>
    %129 = tpu.reciprocal %128 {approx = true} : vector<8x1xf32> -> vector<8x1xf32>
    %130 = vector.broadcast %129 : vector<8x1xf32> to vector<8x8xf32>
    %131 = arith.mulf %126, %130 : vector<8x8xf32>
    %cst_39 = arith.constant dense<0.000000e+00> : vector<8x8xf32>
    %132 = tpu.matmul %131, %120, %cst_39 {dimension_numbers = #tpu.dot_dimension_numbers<[1], [0], [0], [1], [0, 0, 1, 1], [], []>} : vector<8x8xf32>, vector<8x8xf32>, vector<8x8xf32> -> vector<8x8xf32>
    %133 = tpu.concatenate %87, %102, %117, %132 in 1 : vector<8x8xf32>, vector<8x8xf32>, vector<8x8xf32>, vector<8x8xf32> -> vector<8x32xf32>
    %c1 = arith.constant 1 : index
    %c0_40 = arith.constant 0 : index
    %c0_41 = arith.constant 0 : index
    %134 = vector.load %arg3[%c1, %c0_40, %c0_41] : memref<2x8x32xf32, #tpu.memory_space<vmem>>, vector<1x8x32xf32>
    %135 = vector.shape_cast %134 : vector<1x8x32xf32> to vector<8x32xf32>
    %136 = vector.shape_cast %133 : vector<8x32xf32> to vector<1x8x32xf32>
    tpu.vector_store %arg3[%c1, %c0_40, %c0_41], %136 {strides = array<i32>} : memref<2x8x32xf32, #tpu.memory_space<vmem>>, vector<1x8x32xf32>,
    return
  }
  func.func @transform_0(%arg0: i32) -> (i32, i32, i32) {
    %c0_i32 = arith.constant 0 : i32
    %c0_i32_0 = arith.constant 0 : i32
    %c0_i32_1 = arith.constant 0 : i32
    %c0_i32_2 = arith.constant 0 : i32
    return %c0_i32, %c0_i32_0, %c0_i32_1 : i32, i32, i32
  }
  func.func @transform_1(%arg0: i32) -> (i32, i32) {
    %c0_i32 = arith.constant 0 : i32
    %c0_i32_0 = arith.constant 0 : i32
    %c0_i32_1 = arith.constant 0 : i32
    return %c0_i32, %c0_i32_0 : i32, i32
  }
  func.func @transform_2(%arg0: i32) -> (i32, i32, i32) {
    %c0_i32 = arith.constant 0 : i32
    %c0_i32_0 = arith.constant 0 : i32
    %c0_i32_1 = arith.constant 0 : i32
    %c0_i32_2 = arith.constant 0 : i32
    return %c0_i32, %c0_i32_0, %c0_i32_1 : i32, i32, i32
  }
}

</mosaic_0001>

<llo_original>
// kernel: tpu_custom_call.1
$region0: #{tpu_custom_call.1}
  #allocation0 [shape = 'u32[]', space=smem, size = 0x4, offset = 0x4, fixed_abs, tag = 'smem constant byte address 0x4 - core index']
  #allocation1 [shape = 'u32[144,128]{1,0:T(1,128)}', space=vmem, size = 0x12000, scoped, tag = 'internal scratch']
  %s0 = inlined_call_operand.vmem [shape: f32[2,8,32], index: 0, kind: input, shape index: {}]
  %s1 = inlined_call_operand.vmem [shape: f32[96,32], index: 1, kind: input, shape index: {}]
  %s2 = inlined_call_operand.hbm [shape: f32[2,8,32], index: 2, kind: output, shape index: {}]
  %s3 = sld [smem:[#allocation0]]
  $region18: #{tpu_custom_call.1} parent=0
    _
  %s5 = ssub.s32 1, %s3
  %s6 = scalar_select 0, %s5, %s3
  $region1: #{tpu_custom_call.1} parent=0
    #allocation2 [shape = 'u8[8192]{0}', space=vmem, size = 0x2000, scoped, tag = 'output window, operand 0, single buffered']
    #allocation3 [shape = 's32[1]{0}', space=sflag, size = 0x4, scoped, tag = 'scoped memory for tpu_custom_call.1']
    %7 = vsyncpa [#allocation3], 0
    // Predicated region
    $region2: #{tpu_custom_call.1} parent=1 // pred_check
      _
    $region3: #{tpu_custom_call.1} parent=1 // pred_check_branch
      %9 = sbr.rel (0) target = $region5
    $region4: #{tpu_custom_call.1} parent=1 // pred_region
      _
    $region5: #{tpu_custom_call.1} parent=1 // pred_fallthru
      _
    // Predicated region
    $region6: #{tpu_custom_call.1} parent=1 // pred_check
      _
    $region7: #{tpu_custom_call.1} parent=1 // pred_check_branch
      %11 = sbr.rel (0) target = $region9
    $region8: #{tpu_custom_call.1} parent=1 // pred_region
      _
    $region9: #{tpu_custom_call.1} parent=1 // pred_fallthru
      _
    %v12 = vld [vmem:[%s0] sm:$0xff]
    %v13 = vld [vmem:[%s0 + $0x8] sm:$0xff]
    %v14 = vld [vmem:[%s1] sm:$0xff]
    %v15 = vld [vmem:[%s1 + $0x8] sm:$0xff]
    %v16 = vld [vmem:[%s1 + $0x10] sm:$0xff]
    %v17 = vld [vmem:[%s1 + $0x18] sm:$0xff]
    %v18 = vld [vmem:[%s1 + $0x20] sm:$0xff]
    %v19 = vld [vmem:[%s1 + $0x28] sm:$0xff]
    %v20 = vld [vmem:[%s1 + $0x30] sm:$0xff]
    %v21 = vld [vmem:[%s1 + $0x38] sm:$0xff]
    %v22 = vld [vmem:[%s1 + $0x40] sm:$0xff]
    %v23 = vld [vmem:[%s1 + $0x48] sm:$0xff]
    %v24 = vld [vmem:[%s1 + $0x50] sm:$0xff]
    %v25 = vld [vmem:[%s1 + $0x58] sm:$0xff]
    %vm26 = vcmask 261120
    %v28 = vsel %vm26, %v12, 0
    %v31 = vsel %vm26, %v13, 0
    %v34 = vsel %vm26, %v14, 0
    %v37 = vsel %vm26, %v15, 0
    %v40 = vsel %vm26, %v16, 0
    %v43 = vsel %vm26, %v17, 0
    %v46 = vsel %vm26, %v18, 0
    %v49 = vsel %vm26, %v19, 0
    %v52 = vsel %vm26, %v20, 0
    %v55 = vsel %vm26, %v21, 0
    %v58 = vsel %vm26, %v22, 0
    %v61 = vsel %vm26, %v23, 0
    %v64 = vsel %vm26, %v24, 0
    %v67 = vsel %vm26, %v25, 0
    %69 = vmatprep.subr.mxu0 0.0
    %70 = vmatpush1.xpose.msra.mxu0 %v34
    %71 = vmatprep.subr.mxu0 0.0
    %72 = vmatpush1.xpose.msra.mxu0 %v37
    %73 = vmatprep.subr.mxu0 0.0
    %74 = vmatpush1.xpose.msra.mxu0 %v40
    %75 = vmatprep.subr.mxu0 0.0
    %76 = vmatpush1.xpose.msra.mxu0 %v43
    %77 = vmatprep.subr.mxu0 0.0
    %78 = vmatpush1.xpose.msra.mxu0 %v46
    %79 = vmatprep.subr.mxu0 0.0
    %80 = vmatpush1.xpose.msra.mxu0 %v49
    %81 = vmatprep.subr.mxu0 0.0
    %82 = vmatpush1.xpose.msra.mxu0 %v52
    %83 = vmatprep.subr.mxu0 0.0
    %84 = vmatpush1.xpose.msra.mxu0 %v55
    %85 = vmatprep.subr.mxu0 0.0
    %86 = vmatpush1.xpose.msra.mxu0 %v58
    %87 = vmatprep.subr.mxu0 0.0
    %88 = vmatpush1.xpose.msra.mxu0 %v61
    %89 = vmatprep.subr.mxu0 0.0
    %90 = vmatpush1.xpose.msra.mxu0 %v64
    %91 = vmatprep.subr.mxu0 0.0
    %92 = vmatpush1.xpose.msra.mxu0 %v67
    %93 = vmatprep.subr.mxu0 0.0
    %94 = vmatpush1.xpose.msra.mxu0 0.0
    %95 = vmatprep.subr.mxu0 0.0
    %96 = vmatpush1.xpose.msra.mxu0 0.0
    %97 = vmatprep.subr.mxu0 0.0
    %98 = vmatpush1.xpose.msra.mxu0 0.0
    %99 = vmatprep.subr.mxu0 0.0
    %100 = vmatpush1.xpose.msra.mxu0 0.0
    %101 = vmatprep.subr.mxu0 0.0
    %102 = vmatpush1.xpose.msra.mxu0 0.0
    %103 = vmatprep.subr.mxu0 0.0
    %104 = vmatpush1.xpose.msra.mxu0 0.0
    %105 = vmatprep.subr.mxu0 0.0
    %106 = vmatpush1.xpose.msra.mxu0 0.0
    %107 = vmatprep.subr.mxu0 0.0
    %108 = vmatpush1.xpose.msra.mxu0 0.0
    %109 = vmatprep.subr.mxu0 0.0
    %110 = vmatpush1.xpose.msra.mxu0 0.0
    %111 = vmatprep.subr.mxu0 0.0
    %112 = vmatpush1.xpose.msra.mxu0 0.0
    %113 = vmatprep.subr.mxu0 0.0
    %114 = vmatpush1.xpose.msra.mxu0 0.0
    %115 = vmatprep.subr.mxu0 0.0
    %116 = vmatpush1.xpose.msra.mxu0 0.0
    %117 = vmatprep.subr.mxu0 0.0
    %118 = vmatpush1.xpose.msra.mxu0 0.0
    %119 = vmatprep.subr.mxu0 0.0
    %120 = vmatpush1.xpose.msra.mxu0 0.0
    %121 = vmatprep.subr.mxu0 0.0
    %122 = vmatpush1.xpose.msra.mxu0 0.0
    %123 = vmatprep.subr.mxu0 0.0
    %124 = vmatpush1.xpose.msra.mxu0 0.0
    %125 = vmatprep.subr.mxu0 0.0
    %126 = vmatpush1.xpose.msra.mxu0 0.0
    %127 = vmatprep.subr.mxu0 0.0
    %128 = vmatpush1.xpose.msra.mxu0 0.0
    %129 = vmatprep.subr.mxu0 0.0
    %130 = vmatpush1.xpose.msra.mxu0 0.0
    %131 = vmatprep.subr.mxu0 0.0
    %132 = vmatpush1.xpose.msra.mxu0 0.0
    %133 = vmatprep.mubr.f32.mxu0 0.0
    %134 = vmatmul.mubr.f32.gmra.mrb[0].mxu0 %v28
    %v135 = vpop.f32.mrb[0].mxu0
    %v136 = vadd.f32 0.0, %v135
    %v137 = vpop.f32.mrb[0].mxu0
    %138 = vmatprep.mubr.f32.mxu0 0.0
    %139 = vmatmul.mubr.f32.gmra.mrb[0].mxu0 %v31
    %v140 = vpop.f32.mrb[0].mxu0
    %v141 = vadd.f32 0.0, %v140
    %v142 = vpop.f32.mrb[0].mxu0
    %143 = vdwg.mxu0
    %v144 = vmul.f32 %v136, 0.125
    %v145 = vmul.f32 %v141, 0.125
    %147 = vrot.lane.b32.xlu0 %v136, 96
    %v148 = vpop.permute.xlu0 %147
    %vm149 = vcmask 64512
    %v151 = vsel %vm149, %v144, 0
    %v153 = vsel %vm149, %v148, 0
    %155 = vmatprep.subr.mxu0 0.0
    %156 = vmatpush1.xpose.msra.mxu0 %v153
    %157 = vmatprep.subr.mxu0 0.0
    %158 = vmatpush1.xpose.msra.mxu0 0.0
    %159 = vmatprep.subr.mxu0 0.0
    %160 = vmatpush1.xpose.msra.mxu0 0.0
    %161 = vmatprep.subr.mxu0 0.0
    %162 = vmatpush1.xpose.msra.mxu0 0.0
    %163 = vmatprep.subr.mxu0 0.0
    %164 = vmatpush1.xpose.msra.mxu0 0.0
    %165 = vmatprep.subr.mxu0 0.0
    %166 = vmatpush1.xpose.msra.mxu0 0.0
    %167 = vmatprep.subr.mxu0 0.0
    %168 = vmatpush1.xpose.msra.mxu0 0.0
    %169 = vmatprep.subr.mxu0 0.0
    %170 = vmatpush1.xpose.msra.mxu0 0.0
    %171 = vmatprep.subr.mxu0 0.0
    %172 = vmatpush1.xpose.msra.mxu0 0.0
    %173 = vmatprep.subr.mxu0 0.0
    %174 = vmatpush1.xpose.msra.mxu0 0.0
    %175 = vmatprep.subr.mxu0 0.0
    %176 = vmatpush1.xpose.msra.mxu0 0.0
    %177 = vmatprep.subr.mxu0 0.0
    %178 = vmatpush1.xpose.msra.mxu0 0.0
    %179 = vmatprep.subr.mxu0 0.0
    %180 = vmatpush1.xpose.msra.mxu0 0.0
    %181 = vmatprep.subr.mxu0 0.0
    %182 = vmatpush1.xpose.msra.mxu0 0.0
    %183 = vmatprep.subr.mxu0 0.0
    %184 = vmatpush1.xpose.msra.mxu0 0.0
    %185 = vmatprep.subr.mxu0 0.0
    %186 = vmatpush1.xpose.msra.mxu0 0.0
    %187 = vmatprep.subr.mxu0 0.0
    %188 = vmatpush1.xpose.msra.mxu0 0.0
    %189 = vmatprep.subr.mxu0 0.0
    %190 = vmatpush1.xpose.msra.mxu0 0.0
    %191 = vmatprep.subr.mxu0 0.0
    %192 = vmatpush1.xpose.msra.mxu0 0.0
    %193 = vmatprep.subr.mxu0 0.0
    %194 = vmatpush1.xpose.msra.mxu0 0.0
    %195 = vmatprep.subr.mxu0 0.0
    %196 = vmatpush1.xpose.msra.mxu0 0.0
    %197 = vmatprep.subr.mxu0 0.0
    %198 = vmatpush1.xpose.msra.mxu0 0.0
    %199 = vmatprep.subr.mxu0 0.0
    %200 = vmatpush1.xpose.msra.mxu0 0.0
    %201 = vmatprep.subr.mxu0 0.0
    %202 = vmatpush1.xpose.msra.mxu0 0.0
    %203 = vmatprep.subr.mxu0 0.0
    %204 = vmatpush1.xpose.msra.mxu0 0.0
    %205 = vmatprep.subr.mxu0 0.0
    %206 = vmatpush1.xpose.msra.mxu0 0.0
    %207 = vmatprep.subr.mxu0 0.0
    %208 = vmatpush1.xpose.msra.mxu0 0.0
    %209 = vmatprep.subr.mxu0 0.0
    %210 = vmatpush1.xpose.msra.mxu0 0.0
    %211 = vmatprep.subr.mxu0 0.0
    %212 = vmatpush1.xpose.msra.mxu0 0.0
    %213 = vmatprep.subr.mxu0 0.0
    %214 = vmatpush1.xpose.msra.mxu0 0.0
    %215 = vmatprep.subr.mxu0 0.0
    %216 = vmatpush1.xpose.msra.mxu0 0.0
    %217 = vmatprep.subr.mxu0 0.0
    %218 = vmatpush1.xpose.msra.mxu0 0.0
    %219 = vmatprep.mubr.f32.mxu0 0.0
    %220 = vmatmul.mubr.f32.gmra.mrb[0].mxu0 %v151
    %v221 = vpop.f32.mrb[0].mxu0
    %v222 = vadd.f32 0.0, %v221
    %v223 = vpop.f32.mrb[0].mxu0
    %224 = vdwg.mxu0
    %v225 = vsel %vm149, %v222, -inf
    %226 = vmax.xlane.f32.xlu0 %v225
    %v227 = vpop.xlane.xlu0 %226
    %v228 = vsub.f32 %v222, %v227
    %v229 = vmul.f32 %v228, 1.442695
    %v230 = vpow.pop %v229
    %v231 = vsel %vm149, %v230, 0.0
    %232 = vadd.xlane.f32.xlu0 %v231
    %v233 = vpop.xlane.xlu0 %232
    %v234 = vrcp.pop %v233
    %v235 = vmul.f32 %v230, %v234
    %236 = vrot.lane.b32.xlu0 %v136, 64
    %v237 = vpop.permute.xlu0 %236
    %v240 = vsel %vm149, %v235, 0
    %242 = vmatprep.subr.mxu0 0.0
    %243 = vmatpush1.msra.mxu0 %v237
    %244 = vmatprep.subr.mxu0 0.0
    %245 = vmatpush1.msra.mxu0 0.0
    %246 = vmatprep.subr.mxu0 0.0
    %247 = vmatpush1.msra.mxu0 0.0
    %248 = vmatprep.subr.mxu0 0.0
    %249 = vmatpush1.msra.mxu0 0.0
    %250 = vmatprep.subr.mxu0 0.0
    %251 = vmatpush1.msra.mxu0 0.0
    %252 = vmatprep.subr.mxu0 0.0
    %253 = vmatpush1.msra.mxu0 0.0
    %254 = vmatprep.subr.mxu0 0.0
    %255 = vmatpush1.msra.mxu0 0.0
    %256 = vmatprep.subr.mxu0 0.0
    %257 = vmatpush1.msra.mxu0 0.0
    %258 = vmatprep.subr.mxu0 0.0
    %259 = vmatpush1.msra.mxu0 0.0
    %260 = vmatprep.subr.mxu0 0.0
    %261 = vmatpush1.msra.mxu0 0.0
    %262 = vmatprep.subr.mxu0 0.0
    %263 = vmatpush1.msra.mxu0 0.0
    %264 = vmatprep.subr.mxu0 0.0
    %265 = vmatpush1.msra.mxu0 0.0
    %266 = vmatprep.subr.mxu0 0.0
    %267 = vmatpush1.msra.mxu0 0.0
    %268 = vmatprep.subr.mxu0 0.0
    %269 = vmatpush1.msra.mxu0 0.0
    %270 = vmatprep.subr.mxu0 0.0
    %271 = vmatpush1.msra.mxu0 0.0
    %272 = vmatprep.subr.mxu0 0.0
    %273 = vmatpush1.msra.mxu0 0.0
    %274 = vmatprep.subr.mxu0 0.0
    %275 = vmatpush1.msra.mxu0 0.0
    %276 = vmatprep.subr.mxu0 0.0
    %277 = vmatpush1.msra.mxu0 0.0
    %278 = vmatprep.subr.mxu0 0.0
    %279 = vmatpush1.msra.mxu0 0.0
    %280 = vmatprep.subr.mxu0 0.0
    %281 = vmatpush1.msra.mxu0 0.0
    %282 = vmatprep.subr.mxu0 0.0
    %283 = vmatpush1.msra.mxu0 0.0
    %284 = vmatprep.subr.mxu0 0.0
    %285 = vmatpush1.msra.mxu0 0.0
    %286 = vmatprep.subr.mxu0 0.0
    %287 = vmatpush1.msra.mxu0 0.0
    %288 = vmatprep.subr.mxu0 0.0
    %289 = vmatpush1.msra.mxu0 0.0
    %290 = vmatprep.subr.mxu0 0.0
    %291 = vmatpush1.msra.mxu0 0.0
    %292 = vmatprep.subr.mxu0 0.0
    %293 = vmatpush1.msra.mxu0 0.0
    %294 = vmatprep.subr.mxu0 0.0
    %295 = vmatpush1.msra.mxu0 0.0
    %296 = vmatprep.subr.mxu0 0.0
    %297 = vmatpush1.msra.mxu0 0.0
    %298 = vmatprep.subr.mxu0 0.0
    %299 = vmatpush1.msra.mxu0 0.0
    %300 = vmatprep.subr.mxu0 0.0
    %301 = vmatpush1.msra.mxu0 0.0
    %302 = vmatprep.subr.mxu0 0.0
    %303 = vmatpush1.msra.mxu0 0.0
    %304 = vmatprep.subr.mxu0 0.0
    %305 = vmatpush1.msra.mxu0 0.0
    %306 = vmatprep.mubr.f32.mxu0 0.0
    %307 = vmatmul.mubr.f32.gmra.mrb[0].mxu0 %v240
    %v308 = vpop.f32.mrb[0].mxu0
    %v309 = vadd.f32 0.0, %v308
    %v310 = vpop.f32.mrb[0].mxu0
    %311 = vdwg.mxu0
    %312 = vrot.lane.b32.xlu0 %v144, 120
    %v313 = vpop.permute.xlu0 %312
    %314 = vrot.lane.b32.xlu0 %v136, 88
    %v315 = vpop.permute.xlu0 %314
    %v316 = vsel %vm149, %v313, 0
    %v318 = vsel %vm149, %v315, 0
    %320 = vmatprep.subr.mxu0 0.0
    %321 = vmatpush1.xpose.msra.mxu0 %v318
    %322 = vmatprep.subr.mxu0 0.0
    %323 = vmatpush1.xpose.msra.mxu0 0.0
    %324 = vmatprep.subr.mxu0 0.0
    %325 = vmatpush1.xpose.msra.mxu0 0.0
    %326 = vmatprep.subr.mxu0 0.0
    %327 = vmatpush1.xpose.msra.mxu0 0.0
    %328 = vmatprep.subr.mxu0 0.0
    %329 = vmatpush1.xpose.msra.mxu0 0.0
    %330 = vmatprep.subr.mxu0 0.0
    %331 = vmatpush1.xpose.msra.mxu0 0.0
    %332 = vmatprep.subr.mxu0 0.0
    %333 = vmatpush1.xpose.msra.mxu0 0.0
    %334 = vmatprep.subr.mxu0 0.0
    %335 = vmatpush1.xpose.msra.mxu0 0.0
    %336 = vmatprep.subr.mxu0 0.0
    %337 = vmatpush1.xpose.msra.mxu0 0.0
    %338 = vmatprep.subr.mxu0 0.0
    %339 = vmatpush1.xpose.msra.mxu0 0.0
    %340 = vmatprep.subr.mxu0 0.0
    %341 = vmatpush1.xpose.msra.mxu0 0.0
    %342 = vmatprep.subr.mxu0 0.0
    %343 = vmatpush1.xpose.msra.mxu0 0.0
    %344 = vmatprep.subr.mxu0 0.0
    %345 = vmatpush1.xpose.msra.mxu0 0.0
    %346 = vmatprep.subr.mxu0 0.0
    %347 = vmatpush1.xpose.msra.mxu0 0.0
    %348 = vmatprep.subr.mxu0 0.0
    %349 = vmatpush1.xpose.msra.mxu0 0.0
    %350 = vmatprep.subr.mxu0 0.0
    %351 = vmatpush1.xpose.msra.mxu0 0.0
    %352 = vmatprep.subr.mxu0 0.0
    %353 = vmatpush1.xpose.msra.mxu0 0.0
    %354 = vmatprep.subr.mxu0 0.0
    %355 = vmatpush1.xpose.msra.mxu0 0.0
    %356 = vmatprep.subr.mxu0 0.0
    %357 = vmatpush1.xpose.msra.mxu0 0.0
    %358 = vmatprep.subr.mxu0 0.0
    %359 = vmatpush1.xpose.msra.mxu0 0.0
    %360 = vmatprep.subr.mxu0 0.0
    %361 = vmatpush1.xpose.msra.mxu0 0.0
    %362 = vmatprep.subr.mxu0 0.0
    %363 = vmatpush1.xpose.msra.mxu0 0.0
    %364 = vmatprep.subr.mxu0 0.0
    %365 = vmatpush1.xpose.msra.mxu0 0.0
    %366 = vmatprep.subr.mxu0 0.0
    %367 = vmatpush1.xpose.msra.mxu0 0.0
    %368 = vmatprep.subr.mxu0 0.0
    %369 = vmatpush1.xpose.msra.mxu0 0.0
    %370 = vmatprep.subr.mxu0 0.0
    %371 = vmatpush1.xpose.msra.mxu0 0.0
    %372 = vmatprep.subr.mxu0 0.0
    %373 = vmatpush1.xpose.msra.mxu0 0.0
    %374 = vmatprep.subr.mxu0 0.0
    %375 = vmatpush1.xpose.msra.mxu0 0.0
    %376 = vmatprep.subr.mxu0 0.0
    %377 = vmatpush1.xpose.msra.mxu0 0.0
    %378 = vmatprep.subr.mxu0 0.0
    %379 = vmatpush1.xpose.msra.mxu0 0.0
    %380 = vmatprep.subr.mxu0 0.0
    %381 = vmatpush1.xpose.msra.mxu0 0.0
    %382 = vmatprep.subr.mxu0 0.0
    %383 = vmatpush1.xpose.msra.mxu0 0.0
    %384 = vmatprep.mubr.f32.mxu0 0.0
    %385 = vmatmul.mubr.f32.gmra.mrb[0].mxu0 %v316
    %v386 = vpop.f32.mrb[0].mxu0
    %v387 = vadd.f32 0.0, %v386
    %v388 = vpop.f32.mrb[0].mxu0
    %389 = vdwg.mxu0
    %v390 = vsel %vm149, %v387, -inf
    %391 = vmax.xlane.f32.xlu0 %v390
    %v392 = vpop.xlane.xlu0 %391
    %v393 = vsub.f32 %v387, %v392
    %v394 = vmul.f32 %v393, 1.442695
    %v395 = vpow.pop %v394
    %v396 = vsel %vm149, %v395, 0.0
    %397 = vadd.xlane.f32.xlu0 %v396
    %v398 = vpop.xlane.xlu0 %397
    %v399 = vrcp.pop %v398
    %v400 = vmul.f32 %v395, %v399
    %401 = vrot.lane.b32.xlu0 %v136, 56
    %v402 = vpop.permute.xlu0 %401
    %v405 = vsel %vm149, %v400, 0
    %407 = vmatprep.subr.mxu0 0.0
    %408 = vmatpush1.msra.mxu0 %v402
    %409 = vmatprep.subr.mxu0 0.0
    %410 = vmatpush1.msra.mxu0 0.0
    %411 = vmatprep.subr.mxu0 0.0
    %412 = vmatpush1.msra.mxu0 0.0
    %413 = vmatprep.subr.mxu0 0.0
    %414 = vmatpush1.msra.mxu0 0.0
    %415 = vmatprep.subr.mxu0 0.0
    %416 = vmatpush1.msra.mxu0 0.0
    %417 = vmatprep.subr.mxu0 0.0
    %418 = vmatpush1.msra.mxu0 0.0
    %419 = vmatprep.subr.mxu0 0.0
    %420 = vmatpush1.msra.mxu0 0.0
    %421 = vmatprep.subr.mxu0 0.0
    %422 = vmatpush1.msra.mxu0 0.0
    %423 = vmatprep.subr.mxu0 0.0
    %424 = vmatpush1.msra.mxu0 0.0
    %425 = vmatprep.subr.mxu0 0.0
    %426 = vmatpush1.msra.mxu0 0.0
    %427 = vmatprep.subr.mxu0 0.0
    %428 = vmatpush1.msra.mxu0 0.0
    %429 = vmatprep.subr.mxu0 0.0
    %430 = vmatpush1.msra.mxu0 0.0
    %431 = vmatprep.subr.mxu0 0.0
    %432 = vmatpush1.msra.mxu0 0.0
    %433 = vmatprep.subr.mxu0 0.0
    %434 = vmatpush1.msra.mxu0 0.0
    %435 = vmatprep.subr.mxu0 0.0
    %436 = vmatpush1.msra.mxu0 0.0
    %437 = vmatprep.subr.mxu0 0.0
    %438 = vmatpush1.msra.mxu0 0.0
    %439 = vmatprep.subr.mxu0 0.0
    %440 = vmatpush1.msra.mxu0 0.0
    %441 = vmatprep.subr.mxu0 0.0
    %442 = vmatpush1.msra.mxu0 0.0
    %443 = vmatprep.subr.mxu0 0.0
    %444 = vmatpush1.msra.mxu0 0.0
    %445 = vmatprep.subr.mxu0 0.0
    %446 = vmatpush1.msra.mxu0 0.0
    %447 = vmatprep.subr.mxu0 0.0
    %448 = vmatpush1.msra.mxu0 0.0
    %449 = vmatprep.subr.mxu0 0.0
    %450 = vmatpush1.msra.mxu0 0.0
    %451 = vmatprep.subr.mxu0 0.0
    %452 = vmatpush1.msra.mxu0 0.0
    %453 = vmatprep.subr.mxu0 0.0
    %454 = vmatpush1.msra.mxu0 0.0
    %455 = vmatprep.subr.mxu0 0.0
    %456 = vmatpush1.msra.mxu0 0.0
    %457 = vmatprep.subr.mxu0 0.0
    %458 = vmatpush1.msra.mxu0 0.0
    %459 = vmatprep.subr.mxu0 0.0
    %460 = vmatpush1.msra.mxu0 0.0
    %461 = vmatprep.subr.mxu0 0.0
    %462 = vmatpush1.msra.mxu0 0.0
    %463 = vmatprep.subr.mxu0 0.0
    %464 = vmatpush1.msra.mxu0 0.0
    %465 = vmatprep.subr.mxu0 0.0
    %466 = vmatpush1.msra.mxu0 0.0
    %467 = vmatprep.subr.mxu0 0.0
    %468 = vmatpush1.msra.mxu0 0.0
    %469 = vmatprep.subr.mxu0 0.0
    %470 = vmatpush1.msra.mxu0 0.0
    %471 = vmatprep.mubr.f32.mxu0 0.0
    %472 = vmatmul.mubr.f32.gmra.mrb[0].mxu0 %v405
    %v473 = vpop.f32.mrb[0].mxu0
    %v474 = vadd.f32 0.0, %v473
    %v475 = vpop.f32.mrb[0].mxu0
    %476 = vdwg.mxu0
    %477 = vrot.lane.b32.xlu0 %v144, 112
    %v478 = vpop.permute.xlu0 %477
    %479 = vrot.lane.b32.xlu0 %v136, 80
    %v480 = vpop.permute.xlu0 %479
    %v481 = vsel %vm149, %v478, 0
    %v483 = vsel %vm149, %v480, 0
    %485 = vmatprep.subr.mxu0 0.0
    %486 = vmatpush1.xpose.msra.mxu0 %v483
    %487 = vmatprep.subr.mxu0 0.0
    %488 = vmatpush1.xpose.msra.mxu0 0.0
    %489 = vmatprep.subr.mxu0 0.0
    %490 = vmatpush1.xpose.msra.mxu0 0.0
    %491 = vmatprep.subr.mxu0 0.0
    %492 = vmatpush1.xpose.msra.mxu0 0.0
    %493 = vmatprep.subr.mxu0 0.0
    %494 = vmatpush1.xpose.msra.mxu0 0.0
    %495 = vmatprep.subr.mxu0 0.0
    %496 = vmatpush1.xpose.msra.mxu0 0.0
    %497 = vmatprep.subr.mxu0 0.0
    %498 = vmatpush1.xpose.msra.mxu0 0.0
    %499 = vmatprep.subr.mxu0 0.0
    %500 = vmatpush1.xpose.msra.mxu0 0.0
    %501 = vmatprep.subr.mxu0 0.0
    %502 = vmatpush1.xpose.msra.mxu0 0.0
    %503 = vmatprep.subr.mxu0 0.0
    %504 = vmatpush1.xpose.msra.mxu0 0.0
    %505 = vmatprep.subr.mxu0 0.0
    %506 = vmatpush1.xpose.msra.mxu0 0.0
    %507 = vmatprep.subr.mxu0 0.0
    %508 = vmatpush1.xpose.msra.mxu0 0.0
    %509 = vmatprep.subr.mxu0 0.0
    %510 = vmatpush1.xpose.msra.mxu0 0.0
    %511 = vmatprep.subr.mxu0 0.0
    %512 = vmatpush1.xpose.msra.mxu0 0.0
    %513 = vmatprep.subr.mxu0 0.0
    %514 = vmatpush1.xpose.msra.mxu0 0.0
    %515 = vmatprep.subr.mxu0 0.0
    %516 = vmatpush1.xpose.msra.mxu0 0.0
    %517 = vmatprep.subr.mxu0 0.0
    %518 = vmatpush1.xpose.msra.mxu0 0.0
    %519 = vmatprep.subr.mxu0 0.0
    %520 = vmatpush1.xpose.msra.mxu0 0.0
    %521 = vmatprep.subr.mxu0 0.0
    %522 = vmatpush1.xpose.msra.mxu0 0.0
    %523 = vmatprep.subr.mxu0 0.0
    %524 = vmatpush1.xpose.msra.mxu0 0.0
    %525 = vmatprep.subr.mxu0 0.0
    %526 = vmatpush1.xpose.msra.mxu0 0.0
    %527 = vmatprep.subr.mxu0 0.0
    %528 = vmatpush1.xpose.msra.mxu0 0.0
    %529 = vmatprep.subr.mxu0 0.0
    %530 = vmatpush1.xpose.msra.mxu0 0.0
    %531 = vmatprep.subr.mxu0 0.0
    %532 = vmatpush1.xpose.msra.mxu0 0.0
    %533 = vmatprep.subr.mxu0 0.0
    %534 = vmatpush1.xpose.msra.mxu0 0.0
    %535 = vmatprep.subr.mxu0 0.0
    %536 = vmatpush1.xpose.msra.mxu0 0.0
    %537 = vmatprep.subr.mxu0 0.0
    %538 = vmatpush1.xpose.msra.mxu0 0.0
    %539 = vmatprep.subr.mxu0 0.0
    %540 = vmatpush1.xpose.msra.mxu0 0.0
    %541 = vmatprep.subr.mxu0 0.0
    %542 = vmatpush1.xpose.msra.mxu0 0.0
    %543 = vmatprep.subr.mxu0 0.0
    %544 = vmatpush1.xpose.msra.mxu0 0.0
    %545 = vmatprep.subr.mxu0 0.0
    %546 = vmatpush1.xpose.msra.mxu0 0.0
    %547 = vmatprep.subr.mxu0 0.0
    %548 = vmatpush1.xpose.msra.mxu0 0.0
    %549 = vmatprep.mubr.f32.mxu0 0.0
    %550 = vmatmul.mubr.f32.gmra.mrb[0].mxu0 %v481
    %v551 = vpop.f32.mrb[0].mxu0
    %v552 = vadd.f32 0.0, %v551
    %v553 = vpop.f32.mrb[0].mxu0
    %554 = vdwg.mxu0
    %v555 = vsel %vm149, %v552, -inf
    %556 = vmax.xlane.f32.xlu0 %v555
    %v557 = vpop.xlane.xlu0 %556
    %v558 = vsub.f32 %v552, %v557
    %v559 = vmul.f32 %v558, 1.442695
    %v560 = vpow.pop %v559
    %v561 = vsel %vm149, %v560, 0.0
    %562 = vadd.xlane.f32.xlu0 %v561
    %v563 = vpop.xlane.xlu0 %562
    %v564 = vrcp.pop %v563
    %v565 = vmul.f32 %v560, %v564
    %566 = vrot.lane.b32.xlu0 %v136, 48
    %v567 = vpop.permute.xlu0 %566
    %v570 = vsel %vm149, %v565, 0
    %572 = vmatprep.subr.mxu0 0.0
    %573 = vmatpush1.msra.mxu0 %v567
    %574 = vmatprep.subr.mxu0 0.0
    %575 = vmatpush1.msra.mxu0 0.0
    %576 = vmatprep.subr.mxu0 0.0
    %577 = vmatpush1.msra.mxu0 0.0
    %578 = vmatprep.subr.mxu0 0.0
    %579 = vmatpush1.msra.mxu0 0.0
    %580 = vmatprep.subr.mxu0 0.0
    %581 = vmatpush1.msra.mxu0 0.0
    %582 = vmatprep.subr.mxu0 0.0
    %583 = vmatpush1.msra.mxu0 0.0
    %584 = vmatprep.subr.mxu0 0.0
    %585 = vmatpush1.msra.mxu0 0.0
    %586 = vmatprep.subr.mxu0 0.0
    %587 = vmatpush1.msra.mxu0 0.0
    %588 = vmatprep.subr.mxu0 0.0
    %589 = vmatpush1.msra.mxu0 0.0
    %590 = vmatprep.subr.mxu0 0.0
    %591 = vmatpush1.msra.mxu0 0.0
    %592 = vmatprep.subr.mxu0 0.0
    %593 = vmatpush1.msra.mxu0 0.0
    %594 = vmatprep.subr.mxu0 0.0
    %595 = vmatpush1.msra.mxu0 0.0
    %596 = vmatprep.subr.mxu0 0.0
    %597 = vmatpush1.msra.mxu0 0.0
    %598 = vmatprep.subr.mxu0 0.0
    %599 = vmatpush1.msra.mxu0 0.0
    %600 = vmatprep.subr.mxu0 0.0
    %601 = vmatpush1.msra.mxu0 0.0
    %602 = vmatprep.subr.mxu0 0.0
    %603 = vmatpush1.msra.mxu0 0.0
    %604 = vmatprep.subr.mxu0 0.0
    %605 = vmatpush1.msra.mxu0 0.0
    %606 = vmatprep.subr.mxu0 0.0
    %607 = vmatpush1.msra.mxu0 0.0
    %608 = vmatprep.subr.mxu0 0.0
    %609 = vmatpush1.msra.mxu0 0.0
    %610 = vmatprep.subr.mxu0 0.0
    %611 = vmatpush1.msra.mxu0 0.0
    %612 = vmatprep.subr.mxu0 0.0
    %613 = vmatpush1.msra.mxu0 0.0
    %614 = vmatprep.subr.mxu0 0.0
    %615 = vmatpush1.msra.mxu0 0.0
    %616 = vmatprep.subr.mxu0 0.0
    %617 = vmatpush1.msra.mxu0 0.0
    %618 = vmatprep.subr.mxu0 0.0
    %619 = vmatpush1.msra.mxu0 0.0
    %620 = vmatprep.subr.mxu0 0.0
    %621 = vmatpush1.msra.mxu0 0.0
    %622 = vmatprep.subr.mxu0 0.0
    %623 = vmatpush1.msra.mxu0 0.0
    %624 = vmatprep.subr.mxu0 0.0
    %625 = vmatpush1.msra.mxu0 0.0
    %626 = vmatprep.subr.mxu0 0.0
    %627 = vmatpush1.msra.mxu0 0.0
    %628 = vmatprep.subr.mxu0 0.0
    %629 = vmatpush1.msra.mxu0 0.0
    %630 = vmatprep.subr.mxu0 0.0
    %631 = vmatpush1.msra.mxu0 0.0
    %632 = vmatprep.subr.mxu0 0.0
    %633 = vmatpush1.msra.mxu0 0.0
    %634 = vmatprep.subr.mxu0 0.0
    %635 = vmatpush1.msra.mxu0 0.0
    %636 = vmatprep.mubr.f32.mxu0 0.0
    %637 = vmatmul.mubr.f32.gmra.mrb[0].mxu0 %v570
    %v638 = vpop.f32.mrb[0].mxu0
    %v639 = vadd.f32 0.0, %v638
    %v640 = vpop.f32.mrb[0].mxu0
    %641 = vdwg.mxu0
    %642 = vrot.lane.b32.xlu0 %v144, 104
    %v643 = vpop.permute.xlu0 %642
    %644 = vrot.lane.b32.xlu0 %v136, 72
    %v645 = vpop.permute.xlu0 %644
    %v646 = vsel %vm149, %v643, 0
    %v648 = vsel %vm149, %v645, 0
    %650 = vmatprep.subr.mxu0 0.0
    %651 = vmatpush1.xpose.msra.mxu0 %v648
    %652 = vmatprep.subr.mxu0 0.0
    %653 = vmatpush1.xpose.msra.mxu0 0.0
    %654 = vmatprep.subr.mxu0 0.0
    %655 = vmatpush1.xpose.msra.mxu0 0.0
    %656 = vmatprep.subr.mxu0 0.0
    %657 = vmatpush1.xpose.msra.mxu0 0.0
    %658 = vmatprep.subr.mxu0 0.0
    %659 = vmatpush1.xpose.msra.mxu0 0.0
    %660 = vmatprep.subr.mxu0 0.0
    %661 = vmatpush1.xpose.msra.mxu0 0.0
    %662 = vmatprep.subr.mxu0 0.0
    %663 = vmatpush1.xpose.msra.mxu0 0.0
    %664 = vmatprep.subr.mxu0 0.0
    %665 = vmatpush1.xpose.msra.mxu0 0.0
    %666 = vmatprep.subr.mxu0 0.0
    %667 = vmatpush1.xpose.msra.mxu0 0.0
    %668 = vmatprep.subr.mxu0 0.0
    %669 = vmatpush1.xpose.msra.mxu0 0.0
    %670 = vmatprep.subr.mxu0 0.0
    %671 = vmatpush1.xpose.msra.mxu0 0.0
    %672 = vmatprep.subr.mxu0 0.0
    %673 = vmatpush1.xpose.msra.mxu0 0.0
    %674 = vmatprep.subr.mxu0 0.0
    %675 = vmatpush1.xpose.msra.mxu0 0.0
    %676 = vmatprep.subr.mxu0 0.0
    %677 = vmatpush1.xpose.msra.mxu0 0.0
    %678 = vmatprep.subr.mxu0 0.0
    %679 = vmatpush1.xpose.msra.mxu0 0.0
    %680 = vmatprep.subr.mxu0 0.0
    %681 = vmatpush1.xpose.msra.mxu0 0.0
    %682 = vmatprep.subr.mxu0 0.0
    %683 = vmatpush1.xpose.msra.mxu0 0.0
    %684 = vmatprep.subr.mxu0 0.0
    %685 = vmatpush1.xpose.msra.mxu0 0.0
    %686 = vmatprep.subr.mxu0 0.0
    %687 = vmatpush1.xpose.msra.mxu0 0.0
    %688 = vmatprep.subr.mxu0 0.0
    %689 = vmatpush1.xpose.msra.mxu0 0.0
    %690 = vmatprep.subr.mxu0 0.0
    %691 = vmatpush1.xpose.msra.mxu0 0.0
    %692 = vmatprep.subr.mxu0 0.0
    %693 = vmatpush1.xpose.msra.mxu0 0.0
    %694 = vmatprep.subr.mxu0 0.0
    %695 = vmatpush1.xpose.msra.mxu0 0.0
    %696 = vmatprep.subr.mxu0 0.0
    %697 = vmatpush1.xpose.msra.mxu0 0.0
    %698 = vmatprep.subr.mxu0 0.0
    %699 = vmatpush1.xpose.msra.mxu0 0.0
    %700 = vmatprep.subr.mxu0 0.0
    %701 = vmatpush1.xpose.msra.mxu0 0.0
    %702 = vmatprep.subr.mxu0 0.0
    %703 = vmatpush1.xpose.msra.mxu0 0.0
    %704 = vmatprep.subr.mxu0 0.0
    %705 = vmatpush1.xpose.msra.mxu0 0.0
    %706 = vmatprep.subr.mxu0 0.0
    %707 = vmatpush1.xpose.msra.mxu0 0.0
    %708 = vmatprep.subr.mxu0 0.0
    %709 = vmatpush1.xpose.msra.mxu0 0.0
    %710 = vmatprep.subr.mxu0 0.0
    %711 = vmatpush1.xpose.msra.mxu0 0.0
    %712 = vmatprep.subr.mxu0 0.0
    %713 = vmatpush1.xpose.msra.mxu0 0.0
    %714 = vmatprep.mubr.f32.mxu0 0.0
    %715 = vmatmul.mubr.f32.gmra.mrb[0].mxu0 %v646
    %v716 = vpop.f32.mrb[0].mxu0
    %v717 = vadd.f32 0.0, %v716
    %v718 = vpop.f32.mrb[0].mxu0
    %719 = vdwg.mxu0
    %v720 = vsel %vm149, %v717, -inf
    %721 = vmax.xlane.f32.xlu0 %v720
    %v722 = vpop.xlane.xlu0 %721
    %v723 = vsub.f32 %v717, %v722
    %v724 = vmul.f32 %v723, 1.442695
    %v725 = vpow.pop %v724
    %v726 = vsel %vm149, %v725, 0.0
    %727 = vadd.xlane.f32.xlu0 %v726
    %v728 = vpop.xlane.xlu0 %727
    %v729 = vrcp.pop %v728
    %v730 = vmul.f32 %v725, %v729
    %731 = vrot.lane.b32.xlu0 %v136, 40
    %v732 = vpop.permute.xlu0 %731
    %v735 = vsel %vm149, %v730, 0
    %737 = vmatprep.subr.mxu0 0.0
    %738 = vmatpush1.msra.mxu0 %v732
    %739 = vmatprep.subr.mxu0 0.0
    %740 = vmatpush1.msra.mxu0 0.0
    %741 = vmatprep.subr.mxu0 0.0
    %742 = vmatpush1.msra.mxu0 0.0
    %743 = vmatprep.subr.mxu0 0.0
    %744 = vmatpush1.msra.mxu0 0.0
    %745 = vmatprep.subr.mxu0 0.0
    %746 = vmatpush1.msra.mxu0 0.0
    %747 = vmatprep.subr.mxu0 0.0
    %748 = vmatpush1.msra.mxu0 0.0
    %749 = vmatprep.subr.mxu0 0.0
    %750 = vmatpush1.msra.mxu0 0.0
    %751 = vmatprep.subr.mxu0 0.0
    %752 = vmatpush1.msra.mxu0 0.0
    %753 = vmatprep.subr.mxu0 0.0
    %754 = vmatpush1.msra.mxu0 0.0
    %755 = vmatprep.subr.mxu0 0.0
    %756 = vmatpush1.msra.mxu0 0.0
    %757 = vmatprep.subr.mxu0 0.0
    %758 = vmatpush1.msra.mxu0 0.0
    %759 = vmatprep.subr.mxu0 0.0
    %760 = vmatpush1.msra.mxu0 0.0
    %761 = vmatprep.subr.mxu0 0.0
    %762 = vmatpush1.msra.mxu0 0.0
    %763 = vmatprep.subr.mxu0 0.0
    %764 = vmatpush1.msra.mxu0 0.0
    %765 = vmatprep.subr.mxu0 0.0
    %766 = vmatpush1.msra.mxu0 0.0
    %767 = vmatprep.subr.mxu0 0.0
    %768 = vmatpush1.msra.mxu0 0.0
    %769 = vmatprep.subr.mxu0 0.0
    %770 = vmatpush1.msra.mxu0 0.0
    %771 = vmatprep.subr.mxu0 0.0
    %772 = vmatpush1.msra.mxu0 0.0
    %773 = vmatprep.subr.mxu0 0.0
    %774 = vmatpush1.msra.mxu0 0.0
    %775 = vmatprep.subr.mxu0 0.0
    %776 = vmatpush1.msra.mxu0 0.0
    %777 = vmatprep.subr.mxu0 0.0
    %778 = vmatpush1.msra.mxu0 0.0
    %779 = vmatprep.subr.mxu0 0.0
    %780 = vmatpush1.msra.mxu0 0.0
    %781 = vmatprep.subr.mxu0 0.0
    %782 = vmatpush1.msra.mxu0 0.0
    %783 = vmatprep.subr.mxu0 0.0
    %784 = vmatpush1.msra.mxu0 0.0
    %785 = vmatprep.subr.mxu0 0.0
    %786 = vmatpush1.msra.mxu0 0.0
    %787 = vmatprep.subr.mxu0 0.0
    %788 = vmatpush1.msra.mxu0 0.0
    %789 = vmatprep.subr.mxu0 0.0
    %790 = vmatpush1.msra.mxu0 0.0
    %791 = vmatprep.subr.mxu0 0.0
    %792 = vmatpush1.msra.mxu0 0.0
    %793 = vmatprep.subr.mxu0 0.0
    %794 = vmatpush1.msra.mxu0 0.0
    %795 = vmatprep.subr.mxu0 0.0
    %796 = vmatpush1.msra.mxu0 0.0
    %797 = vmatprep.subr.mxu0 0.0
    %798 = vmatpush1.msra.mxu0 0.0
    %799 = vmatprep.subr.mxu0 0.0
    %800 = vmatpush1.msra.mxu0 0.0
    %801 = vmatprep.mubr.f32.mxu0 0.0
    %802 = vmatmul.mubr.f32.gmra.mrb[0].mxu0 %v735
    %v803 = vpop.f32.mrb[0].mxu0
    %v804 = vadd.f32 0.0, %v803
    %v805 = vpop.f32.mrb[0].mxu0
    %806 = vdwg.mxu0
    %808 = vrot.lane.b32.xlu0 %v474, 8
    %v809 = vpop.permute.xlu0 %808
    %812 = vrot.lane.b32.xlu0 %v639, 16
    %v813 = vpop.permute.xlu0 %812
    %816 = vrot.lane.b32.xlu0 %v804, 24
    %v817 = vpop.permute.xlu0 %816
    %v819 = vsel %vm149, %v309, %v809
    %vm820 = vcmask 130048
    %v821 = vsel %vm820, %v819, %v813
    %vm822 = vcmask 195584
    %v823 = vsel %vm822, %v821, %v817
    %824 = vst.msk [vmem:[#allocation2] sm:$0xff] %vm26, %v823
    %826 = vrot.lane.b32.xlu0 %v141, 96
    %v827 = vpop.permute.xlu0 %826
    %v829 = vsel %vm149, %v145, 0
    %v831 = vsel %vm149, %v827, 0
    %833 = vmatprep.subr.mxu0 0.0
    %834 = vmatpush1.xpose.msra.mxu0 %v831
    %835 = vmatprep.subr.mxu0 0.0
    %836 = vmatpush1.xpose.msra.mxu0 0.0
    %837 = vmatprep.subr.mxu0 0.0
    %838 = vmatpush1.xpose.msra.mxu0 0.0
    %839 = vmatprep.subr.mxu0 0.0
    %840 = vmatpush1.xpose.msra.mxu0 0.0
    %841 = vmatprep.subr.mxu0 0.0
    %842 = vmatpush1.xpose.msra.mxu0 0.0
    %843 = vmatprep.subr.mxu0 0.0
    %844 = vmatpush1.xpose.msra.mxu0 0.0
    %845 = vmatprep.subr.mxu0 0.0
    %846 = vmatpush1.xpose.msra.mxu0 0.0
    %847 = vmatprep.subr.mxu0 0.0
    %848 = vmatpush1.xpose.msra.mxu0 0.0
    %849 = vmatprep.subr.mxu0 0.0
    %850 = vmatpush1.xpose.msra.mxu0 0.0
    %851 = vmatprep.subr.mxu0 0.0
    %852 = vmatpush1.xpose.msra.mxu0 0.0
    %853 = vmatprep.subr.mxu0 0.0
    %854 = vmatpush1.xpose.msra.mxu0 0.0
    %855 = vmatprep.subr.mxu0 0.0
    %856 = vmatpush1.xpose.msra.mxu0 0.0
    %857 = vmatprep.subr.mxu0 0.0
    %858 = vmatpush1.xpose.msra.mxu0 0.0
    %859 = vmatprep.subr.mxu0 0.0
    %860 = vmatpush1.xpose.msra.mxu0 0.0
    %861 = vmatprep.subr.mxu0 0.0
    %862 = vmatpush1.xpose.msra.mxu0 0.0
    %863 = vmatprep.subr.mxu0 0.0
    %864 = vmatpush1.xpose.msra.mxu0 0.0
    %865 = vmatprep.subr.mxu0 0.0
    %866 = vmatpush1.xpose.msra.mxu0 0.0
    %867 = vmatprep.subr.mxu0 0.0
    %868 = vmatpush1.xpose.msra.mxu0 0.0
    %869 = vmatprep.subr.mxu0 0.0
    %870 = vmatpush1.xpose.msra.mxu0 0.0
    %871 = vmatprep.subr.mxu0 0.0
    %872 = vmatpush1.xpose.msra.mxu0 0.0
    %873 = vmatprep.subr.mxu0 0.0
    %874 = vmatpush1.xpose.msra.mxu0 0.0
    %875 = vmatprep.subr.mxu0 0.0
    %876 = vmatpush1.xpose.msra.mxu0 0.0
    %877 = vmatprep.subr.mxu0 0.0
    %878 = vmatpush1.xpose.msra.mxu0 0.0
    %879 = vmatprep.subr.mxu0 0.0
    %880 = vmatpush1.xpose.msra.mxu0 0.0
    %881 = vmatprep.subr.mxu0 0.0
    %882 = vmatpush1.xpose.msra.mxu0 0.0
    %883 = vmatprep.subr.mxu0 0.0
    %884 = vmatpush1.xpose.msra.mxu0 0.0
    %885 = vmatprep.subr.mxu0 0.0
    %886 = vmatpush1.xpose.msra.mxu0 0.0
    %887 = vmatprep.subr.mxu0 0.0
    %888 = vmatpush1.xpose.msra.mxu0 0.0
    %889 = vmatprep.subr.mxu0 0.0
    %890 = vmatpush1.xpose.msra.mxu0 0.0
    %891 = vmatprep.subr.mxu0 0.0
    %892 = vmatpush1.xpose.msra.mxu0 0.0
    %893 = vmatprep.subr.mxu0 0.0
    %894 = vmatpush1.xpose.msra.mxu0 0.0
    %895 = vmatprep.subr.mxu0 0.0
    %896 = vmatpush1.xpose.msra.mxu0 0.0
    %897 = vmatprep.mubr.f32.mxu0 0.0
    %898 = vmatmul.mubr.f32.gmra.mrb[0].mxu0 %v829
    %v899 = vpop.f32.mrb[0].mxu0
    %v900 = vadd.f32 0.0, %v899
    %v901 = vpop.f32.mrb[0].mxu0
    %902 = vdwg.mxu0
    %v903 = vsel %vm149, %v900, -inf
    %904 = vmax.xlane.f32.xlu0 %v903
    %v905 = vpop.xlane.xlu0 %904
    %v906 = vsub.f32 %v900, %v905
    %v907 = vmul.f32 %v906, 1.442695
    %v908 = vpow.pop %v907
    %v909 = vsel %vm149, %v908, 0.0
    %910 = vadd.xlane.f32.xlu0 %v909
    %v911 = vpop.xlane.xlu0 %910
    %v912 = vrcp.pop %v911
    %v913 = vmul.f32 %v908, %v912
    %914 = vrot.lane.b32.xlu0 %v141, 64
    %v915 = vpop.permute.xlu0 %914
    %v918 = vsel %vm149, %v913, 0
    %920 = vmatprep.subr.mxu0 0.0
    %921 = vmatpush1.msra.mxu0 %v915
    %922 = vmatprep.subr.mxu0 0.0
    %923 = vmatpush1.msra.mxu0 0.0
    %924 = vmatprep.subr.mxu0 0.0
    %925 = vmatpush1.msra.mxu0 0.0
    %926 = vmatprep.subr.mxu0 0.0
    %927 = vmatpush1.msra.mxu0 0.0
    %928 = vmatprep.subr.mxu0 0.0
    %929 = vmatpush1.msra.mxu0 0.0
    %930 = vmatprep.subr.mxu0 0.0
    %931 = vmatpush1.msra.mxu0 0.0
    %932 = vmatprep.subr.mxu0 0.0
    %933 = vmatpush1.msra.mxu0 0.0
    %934 = vmatprep.subr.mxu0 0.0
    %935 = vmatpush1.msra.mxu0 0.0
    %936 = vmatprep.subr.mxu0 0.0
    %937 = vmatpush1.msra.mxu0 0.0
    %938 = vmatprep.subr.mxu0 0.0
    %939 = vmatpush1.msra.mxu0 0.0
    %940 = vmatprep.subr.mxu0 0.0
    %941 = vmatpush1.msra.mxu0 0.0
    %942 = vmatprep.subr.mxu0 0.0
    %943 = vmatpush1.msra.mxu0 0.0
    %944 = vmatprep.subr.mxu0 0.0
    %945 = vmatpush1.msra.mxu0 0.0
    %946 = vmatprep.subr.mxu0 0.0
    %947 = vmatpush1.msra.mxu0 0.0
    %948 = vmatprep.subr.mxu0 0.0
    %949 = vmatpush1.msra.mxu0 0.0
    %950 = vmatprep.subr.mxu0 0.0
    %951 = vmatpush1.msra.mxu0 0.0
    %952 = vmatprep.subr.mxu0 0.0
    %953 = vmatpush1.msra.mxu0 0.0
    %954 = vmatprep.subr.mxu0 0.0
    %955 = vmatpush1.msra.mxu0 0.0
    %956 = vmatprep.subr.mxu0 0.0
    %957 = vmatpush1.msra.mxu0 0.0
    %958 = vmatprep.subr.mxu0 0.0
    %959 = vmatpush1.msra.mxu0 0.0
    %960 = vmatprep.subr.mxu0 0.0
    %961 = vmatpush1.msra.mxu0 0.0
    %962 = vmatprep.subr.mxu0 0.0
    %963 = vmatpush1.msra.mxu0 0.0
    %964 = vmatprep.subr.mxu0 0.0
    %965 = vmatpush1.msra.mxu0 0.0
    %966 = vmatprep.subr.mxu0 0.0
    %967 = vmatpush1.msra.mxu0 0.0
    %968 = vmatprep.subr.mxu0 0.0
    %969 = vmatpush1.msra.mxu0 0.0
    %970 = vmatprep.subr.mxu0 0.0
    %971 = vmatpush1.msra.mxu0 0.0
    %972 = vmatprep.subr.mxu0 0.0
    %973 = vmatpush1.msra.mxu0 0.0
    %974 = vmatprep.subr.mxu0 0.0
    %975 = vmatpush1.msra.mxu0 0.0
    %976 = vmatprep.subr.mxu0 0.0
    %977 = vmatpush1.msra.mxu0 0.0
    %978 = vmatprep.subr.mxu0 0.0
    %979 = vmatpush1.msra.mxu0 0.0
    %980 = vmatprep.subr.mxu0 0.0
    %981 = vmatpush1.msra.mxu0 0.0
    %982 = vmatprep.subr.mxu0 0.0
    %983 = vmatpush1.msra.mxu0 0.0
    %984 = vmatprep.mubr.f32.mxu0 0.0
    %985 = vmatmul.mubr.f32.gmra.mrb[0].mxu0 %v918
    %v986 = vpop.f32.mrb[0].mxu0
    %v987 = vadd.f32 0.0, %v986
    %v988 = vpop.f32.mrb[0].mxu0
    %989 = vdwg.mxu0
    %990 = vrot.lane.b32.xlu0 %v145, 120
    %v991 = vpop.permute.xlu0 %990
    %992 = vrot.lane.b32.xlu0 %v141, 88
    %v993 = vpop.permute.xlu0 %992
    %v994 = vsel %vm149, %v991, 0
    %v996 = vsel %vm149, %v993, 0
    %998 = vmatprep.subr.mxu0 0.0
    %999 = vmatpush1.xpose.msra.mxu0 %v996
    %1000 = vmatprep.subr.mxu0 0.0
    %1001 = vmatpush1.xpose.msra.mxu0 0.0
    %1002 = vmatprep.subr.mxu0 0.0
    %1003 = vmatpush1.xpose.msra.mxu0 0.0
    %1004 = vmatprep.subr.mxu0 0.0
    %1005 = vmatpush1.xpose.msra.mxu0 0.0
    %1006 = vmatprep.subr.mxu0 0.0
    %1007 = vmatpush1.xpose.msra.mxu0 0.0
    %1008 = vmatprep.subr.mxu0 0.0
    %1009 = vmatpush1.xpose.msra.mxu0 0.0
    %1010 = vmatprep.subr.mxu0 0.0
    %1011 = vmatpush1.xpose.msra.mxu0 0.0
    %1012 = vmatprep.subr.mxu0 0.0
    %1013 = vmatpush1.xpose.msra.mxu0 0.0
    %1014 = vmatprep.subr.mxu0 0.0
    %1015 = vmatpush1.xpose.msra.mxu0 0.0
    %1016 = vmatprep.subr.mxu0 0.0
    %1017 = vmatpush1.xpose.msra.mxu0 0.0
    %1018 = vmatprep.subr.mxu0 0.0
    %1019 = vmatpush1.xpose.msra.mxu0 0.0
    %1020 = vmatprep.subr.mxu0 0.0
    %1021 = vmatpush1.xpose.msra.mxu0 0.0
    %1022 = vmatprep.subr.mxu0 0.0
    %1023 = vmatpush1.xpose.msra.mxu0 0.0
    %1024 = vmatprep.subr.mxu0 0.0
    %1025 = vmatpush1.xpose.msra.mxu0 0.0
    %1026 = vmatprep.subr.mxu0 0.0
    %1027 = vmatpush1.xpose.msra.mxu0 0.0
    %1028 = vmatprep.subr.mxu0 0.0
    %1029 = vmatpush1.xpose.msra.mxu0 0.0
    %1030 = vmatprep.subr.mxu0 0.0
    %1031 = vmatpush1.xpose.msra.mxu0 0.0
    %1032 = vmatprep.subr.mxu0 0.0
    %1033 = vmatpush1.xpose.msra.mxu0 0.0
    %1034 = vmatprep.subr.mxu0 0.0
    %1035 = vmatpush1.xpose.msra.mxu0 0.0
    %1036 = vmatprep.subr.mxu0 0.0
    %1037 = vmatpush1.xpose.msra.mxu0 0.0
    %1038 = vmatprep.subr.mxu0 0.0
    %1039 = vmatpush1.xpose.msra.mxu0 0.0
    %1040 = vmatprep.subr.mxu0 0.0
    %1041 = vmatpush1.xpose.msra.mxu0 0.0
    %1042 = vmatprep.subr.mxu0 0.0
    %1043 = vmatpush1.xpose.msra.mxu0 0.0
    %1044 = vmatprep.subr.mxu0 0.0
    %1045 = vmatpush1.xpose.msra.mxu0 0.0
    %1046 = vmatprep.subr.mxu0 0.0
    %1047 = vmatpush1.xpose.msra.mxu0 0.0
    %1048 = vmatprep.subr.mxu0 0.0
    %1049 = vmatpush1.xpose.msra.mxu0 0.0
    %1050 = vmatprep.subr.mxu0 0.0
    %1051 = vmatpush1.xpose.msra.mxu0 0.0
    %1052 = vmatprep.subr.mxu0 0.0
    %1053 = vmatpush1.xpose.msra.mxu0 0.0
    %1054 = vmatprep.subr.mxu0 0.0
    %1055 = vmatpush1.xpose.msra.mxu0 0.0
    %1056 = vmatprep.subr.mxu0 0.0
    %1057 = vmatpush1.xpose.msra.mxu0 0.0
    %1058 = vmatprep.subr.mxu0 0.0
    %1059 = vmatpush1.xpose.msra.mxu0 0.0
    %1060 = vmatprep.subr.mxu0 0.0
    %1061 = vmatpush1.xpose.msra.mxu0 0.0
    %1062 = vmatprep.mubr.f32.mxu0 0.0
    %1063 = vmatmul.mubr.f32.gmra.mrb[0].mxu0 %v994
    %v1064 = vpop.f32.mrb[0].mxu0
    %v1065 = vadd.f32 0.0, %v1064
    %v1066 = vpop.f32.mrb[0].mxu0
    %1067 = vdwg.mxu0
    %v1068 = vsel %vm149, %v1065, -inf
    %1069 = vmax.xlane.f32.xlu0 %v1068
    %v1070 = vpop.xlane.xlu0 %1069
    %v1071 = vsub.f32 %v1065, %v1070
    %v1072 = vmul.f32 %v1071, 1.442695
    %v1073 = vpow.pop %v1072
    %v1074 = vsel %vm149, %v1073, 0.0
    %1075 = vadd.xlane.f32.xlu0 %v1074
    %v1076 = vpop.xlane.xlu0 %1075
    %v1077 = vrcp.pop %v1076
    %v1078 = vmul.f32 %v1073, %v1077
    %1079 = vrot.lane.b32.xlu0 %v141, 56
    %v1080 = vpop.permute.xlu0 %1079
    %v1083 = vsel %vm149, %v1078, 0
    %1085 = vmatprep.subr.mxu0 0.0
    %1086 = vmatpush1.msra.mxu0 %v1080
    %1087 = vmatprep.subr.mxu0 0.0
    %1088 = vmatpush1.msra.mxu0 0.0
    %1089 = vmatprep.subr.mxu0 0.0
    %1090 = vmatpush1.msra.mxu0 0.0
    %1091 = vmatprep.subr.mxu0 0.0
    %1092 = vmatpush1.msra.mxu0 0.0
    %1093 = vmatprep.subr.mxu0 0.0
    %1094 = vmatpush1.msra.mxu0 0.0
    %1095 = vmatprep.subr.mxu0 0.0
    %1096 = vmatpush1.msra.mxu0 0.0
    %1097 = vmatprep.subr.mxu0 0.0
    %1098 = vmatpush1.msra.mxu0 0.0
    %1099 = vmatprep.subr.mxu0 0.0
    %1100 = vmatpush1.msra.mxu0 0.0
    %1101 = vmatprep.subr.mxu0 0.0
    %1102 = vmatpush1.msra.mxu0 0.0
    %1103 = vmatprep.subr.mxu0 0.0
    %1104 = vmatpush1.msra.mxu0 0.0
    %1105 = vmatprep.subr.mxu0 0.0
    %1106 = vmatpush1.msra.mxu0 0.0
    %1107 = vmatprep.subr.mxu0 0.0
    %1108 = vmatpush1.msra.mxu0 0.0
    %1109 = vmatprep.subr.mxu0 0.0
    %1110 = vmatpush1.msra.mxu0 0.0
    %1111 = vmatprep.subr.mxu0 0.0
    %1112 = vmatpush1.msra.mxu0 0.0
    %1113 = vmatprep.subr.mxu0 0.0
    %1114 = vmatpush1.msra.mxu0 0.0
    %1115 = vmatprep.subr.mxu0 0.0
    %1116 = vmatpush1.msra.mxu0 0.0
    %1117 = vmatprep.subr.mxu0 0.0
    %1118 = vmatpush1.msra.mxu0 0.0
    %1119 = vmatprep.subr.mxu0 0.0
    %1120 = vmatpush1.msra.mxu0 0.0
    %1121 = vmatprep.subr.mxu0 0.0
    %1122 = vmatpush1.msra.mxu0 0.0
    %1123 = vmatprep.subr.mxu0 0.0
    %1124 = vmatpush1.msra.mxu0 0.0
    %1125 = vmatprep.subr.mxu0 0.0
    %1126 = vmatpush1.msra.mxu0 0.0
    %1127 = vmatprep.subr.mxu0 0.0
    %1128 = vmatpush1.msra.mxu0 0.0
    %1129 = vmatprep.subr.mxu0 0.0
    %1130 = vmatpush1.msra.mxu0 0.0
    %1131 = vmatprep.subr.mxu0 0.0
    %1132 = vmatpush1.msra.mxu0 0.0
    %1133 = vmatprep.subr.mxu0 0.0
    %1134 = vmatpush1.msra.mxu0 0.0
    %1135 = vmatprep.subr.mxu0 0.0
    %1136 = vmatpush1.msra.mxu0 0.0
    %1137 = vmatprep.subr.mxu0 0.0
    %1138 = vmatpush1.msra.mxu0 0.0
    %1139 = vmatprep.subr.mxu0 0.0
    %1140 = vmatpush1.msra.mxu0 0.0
    %1141 = vmatprep.subr.mxu0 0.0
    %1142 = vmatpush1.msra.mxu0 0.0
    %1143 = vmatprep.subr.mxu0 0.0
    %1144 = vmatpush1.msra.mxu0 0.0
    %1145 = vmatprep.subr.mxu0 0.0
    %1146 = vmatpush1.msra.mxu0 0.0
    %1147 = vmatprep.subr.mxu0 0.0
    %1148 = vmatpush1.msra.mxu0 0.0
    %1149 = vmatprep.mubr.f32.mxu0 0.0
    %1150 = vmatmul.mubr.f32.gmra.mrb[0].mxu0 %v1083
    %v1151 = vpop.f32.mrb[0].mxu0
    %v1152 = vadd.f32 0.0, %v1151
    %v1153 = vpop.f32.mrb[0].mxu0
    %1154 = vdwg.mxu0
    %1155 = vrot.lane.b32.xlu0 %v145, 112
    %v1156 = vpop.permute.xlu0 %1155
    %1157 = vrot.lane.b32.xlu0 %v141, 80
    %v1158 = vpop.permute.xlu0 %1157
    %v1159 = vsel %vm149, %v1156, 0
    %v1161 = vsel %vm149, %v1158, 0
    %1163 = vmatprep.subr.mxu0 0.0
    %1164 = vmatpush1.xpose.msra.mxu0 %v1161
    %1165 = vmatprep.subr.mxu0 0.0
    %1166 = vmatpush1.xpose.msra.mxu0 0.0
    %1167 = vmatprep.subr.mxu0 0.0
    %1168 = vmatpush1.xpose.msra.mxu0 0.0
    %1169 = vmatprep.subr.mxu0 0.0
    %1170 = vmatpush1.xpose.msra.mxu0 0.0
    %1171 = vmatprep.subr.mxu0 0.0
    %1172 = vmatpush1.xpose.msra.mxu0 0.0
    %1173 = vmatprep.subr.mxu0 0.0
    %1174 = vmatpush1.xpose.msra.mxu0 0.0
    %1175 = vmatprep.subr.mxu0 0.0
    %1176 = vmatpush1.xpose.msra.mxu0 0.0
    %1177 = vmatprep.subr.mxu0 0.0
    %1178 = vmatpush1.xpose.msra.mxu0 0.0
    %1179 = vmatprep.subr.mxu0 0.0
    %1180 = vmatpush1.xpose.msra.mxu0 0.0
    %1181 = vmatprep.subr.mxu0 0.0
    %1182 = vmatpush1.xpose.msra.mxu0 0.0
    %1183 = vmatprep.subr.mxu0 0.0
    %1184 = vmatpush1.xpose.msra.mxu0 0.0
    %1185 = vmatprep.subr.mxu0 0.0
    %1186 = vmatpush1.xpose.msra.mxu0 0.0
    %1187 = vmatprep.subr.mxu0 0.0
    %1188 = vmatpush1.xpose.msra.mxu0 0.0
    %1189 = vmatprep.subr.mxu0 0.0
    %1190 = vmatpush1.xpose.msra.mxu0 0.0
    %1191 = vmatprep.subr.mxu0 0.0
    %1192 = vmatpush1.xpose.msra.mxu0 0.0
    %1193 = vmatprep.subr.mxu0 0.0
    %1194 = vmatpush1.xpose.msra.mxu0 0.0
    %1195 = vmatprep.subr.mxu0 0.0
    %1196 = vmatpush1.xpose.msra.mxu0 0.0
    %1197 = vmatprep.subr.mxu0 0.0
    %1198 = vmatpush1.xpose.msra.mxu0 0.0
    %1199 = vmatprep.subr.mxu0 0.0
    %1200 = vmatpush1.xpose.msra.mxu0 0.0
    %1201 = vmatprep.subr.mxu0 0.0
    %1202 = vmatpush1.xpose.msra.mxu0 0.0
    %1203 = vmatprep.subr.mxu0 0.0
    %1204 = vmatpush1.xpose.msra.mxu0 0.0
    %1205 = vmatprep.subr.mxu0 0.0
    %1206 = vmatpush1.xpose.msra.mxu0 0.0
    %1207 = vmatprep.subr.mxu0 0.0
    %1208 = vmatpush1.xpose.msra.mxu0 0.0
    %1209 = vmatprep.subr.mxu0 0.0
    %1210 = vmatpush1.xpose.msra.mxu0 0.0
    %1211 = vmatprep.subr.mxu0 0.0
    %1212 = vmatpush1.xpose.msra.mxu0 0.0
    %1213 = vmatprep.subr.mxu0 0.0
    %1214 = vmatpush1.xpose.msra.mxu0 0.0
    %1215 = vmatprep.subr.mxu0 0.0
    %1216 = vmatpush1.xpose.msra.mxu0 0.0
    %1217 = vmatprep.subr.mxu0 0.0
    %1218 = vmatpush1.xpose.msra.mxu0 0.0
    %1219 = vmatprep.subr.mxu0 0.0
    %1220 = vmatpush1.xpose.msra.mxu0 0.0
    %1221 = vmatprep.subr.mxu0 0.0
    %1222 = vmatpush1.xpose.msra.mxu0 0.0
    %1223 = vmatprep.subr.mxu0 0.0
    %1224 = vmatpush1.xpose.msra.mxu0 0.0
    %1225 = vmatprep.subr.mxu0 0.0
    %1226 = vmatpush1.xpose.msra.mxu0 0.0
    %1227 = vmatprep.mubr.f32.mxu0 0.0
    %1228 = vmatmul.mubr.f32.gmra.mrb[0].mxu0 %v1159
    %v1229 = vpop.f32.mrb[0].mxu0
    %v1230 = vadd.f32 0.0, %v1229
    %v1231 = vpop.f32.mrb[0].mxu0
    %1232 = vdwg.mxu0
    %v1233 = vsel %vm149, %v1230, -inf
    %1234 = vmax.xlane.f32.xlu0 %v1233
    %v1235 = vpop.xlane.xlu0 %1234
    %v1236 = vsub.f32 %v1230, %v1235
    %v1237 = vmul.f32 %v1236, 1.442695
    %v1238 = vpow.pop %v1237
    %v1239 = vsel %vm149, %v1238, 0.0
    %1240 = vadd.xlane.f32.xlu0 %v1239
    %v1241 = vpop.xlane.xlu0 %1240
    %v1242 = vrcp.pop %v1241
    %v1243 = vmul.f32 %v1238, %v1242
    %1244 = vrot.lane.b32.xlu0 %v141, 48
    %v1245 = vpop.permute.xlu0 %1244
    %v1248 = vsel %vm149, %v1243, 0
    %1250 = vmatprep.subr.mxu0 0.0
    %1251 = vmatpush1.msra.mxu0 %v1245
    %1252 = vmatprep.subr.mxu0 0.0
    %1253 = vmatpush1.msra.mxu0 0.0
    %1254 = vmatprep.subr.mxu0 0.0
    %1255 = vmatpush1.msra.mxu0 0.0
    %1256 = vmatprep.subr.mxu0 0.0
    %1257 = vmatpush1.msra.mxu0 0.0
    %1258 = vmatprep.subr.mxu0 0.0
    %1259 = vmatpush1.msra.mxu0 0.0
    %1260 = vmatprep.subr.mxu0 0.0
    %1261 = vmatpush1.msra.mxu0 0.0
    %1262 = vmatprep.subr.mxu0 0.0
    %1263 = vmatpush1.msra.mxu0 0.0
    %1264 = vmatprep.subr.mxu0 0.0
    %1265 = vmatpush1.msra.mxu0 0.0
    %1266 = vmatprep.subr.mxu0 0.0
    %1267 = vmatpush1.msra.mxu0 0.0
    %1268 = vmatprep.subr.mxu0 0.0
    %1269 = vmatpush1.msra.mxu0 0.0
    %1270 = vmatprep.subr.mxu0 0.0
    %1271 = vmatpush1.msra.mxu0 0.0
    %1272 = vmatprep.subr.mxu0 0.0
    %1273 = vmatpush1.msra.mxu0 0.0
    %1274 = vmatprep.subr.mxu0 0.0
    %1275 = vmatpush1.msra.mxu0 0.0
    %1276 = vmatprep.subr.mxu0 0.0
    %1277 = vmatpush1.msra.mxu0 0.0
    %1278 = vmatprep.subr.mxu0 0.0
    %1279 = vmatpush1.msra.mxu0 0.0
    %1280 = vmatprep.subr.mxu0 0.0
    %1281 = vmatpush1.msra.mxu0 0.0
    %1282 = vmatprep.subr.mxu0 0.0
    %1283 = vmatpush1.msra.mxu0 0.0
    %1284 = vmatprep.subr.mxu0 0.0
    %1285 = vmatpush1.msra.mxu0 0.0
    %1286 = vmatprep.subr.mxu0 0.0
    %1287 = vmatpush1.msra.mxu0 0.0
    %1288 = vmatprep.subr.mxu0 0.0
    %1289 = vmatpush1.msra.mxu0 0.0
    %1290 = vmatprep.subr.mxu0 0.0
    %1291 = vmatpush1.msra.mxu0 0.0
    %1292 = vmatprep.subr.mxu0 0.0
    %1293 = vmatpush1.msra.mxu0 0.0
    %1294 = vmatprep.subr.mxu0 0.0
    %1295 = vmatpush1.msra.mxu0 0.0
    %1296 = vmatprep.subr.mxu0 0.0
    %1297 = vmatpush1.msra.mxu0 0.0
    %1298 = vmatprep.subr.mxu0 0.0
    %1299 = vmatpush1.msra.mxu0 0.0
    %1300 = vmatprep.subr.mxu0 0.0
    %1301 = vmatpush1.msra.mxu0 0.0
    %1302 = vmatprep.subr.mxu0 0.0
    %1303 = vmatpush1.msra.mxu0 0.0
    %1304 = vmatprep.subr.mxu0 0.0
    %1305 = vmatpush1.msra.mxu0 0.0
    %1306 = vmatprep.subr.mxu0 0.0
    %1307 = vmatpush1.msra.mxu0 0.0
    %1308 = vmatprep.subr.mxu0 0.0
    %1309 = vmatpush1.msra.mxu0 0.0
    %1310 = vmatprep.subr.mxu0 0.0
    %1311 = vmatpush1.msra.mxu0 0.0
    %1312 = vmatprep.subr.mxu0 0.0
    %1313 = vmatpush1.msra.mxu0 0.0
    %1314 = vmatprep.mubr.f32.mxu0 0.0
    %1315 = vmatmul.mubr.f32.gmra.mrb[0].mxu0 %v1248
    %v1316 = vpop.f32.mrb[0].mxu0
    %v1317 = vadd.f32 0.0, %v1316
    %v1318 = vpop.f32.mrb[0].mxu0
    %1319 = vdwg.mxu0
    %1320 = vrot.lane.b32.xlu0 %v145, 104
    %v1321 = vpop.permute.xlu0 %1320
    %1322 = vrot.lane.b32.xlu0 %v141, 72
    %v1323 = vpop.permute.xlu0 %1322
    %v1324 = vsel %vm149, %v1321, 0
    %v1326 = vsel %vm149, %v1323, 0
    %1328 = vmatprep.subr.mxu0 0.0
    %1329 = vmatpush1.xpose.msra.mxu0 %v1326
    %1330 = vmatprep.subr.mxu0 0.0
    %1331 = vmatpush1.xpose.msra.mxu0 0.0
    %1332 = vmatprep.subr.mxu0 0.0
    %1333 = vmatpush1.xpose.msra.mxu0 0.0
    %1334 = vmatprep.subr.mxu0 0.0
    %1335 = vmatpush1.xpose.msra.mxu0 0.0
    %1336 = vmatprep.subr.mxu0 0.0
    %1337 = vmatpush1.xpose.msra.mxu0 0.0
    %1338 = vmatprep.subr.mxu0 0.0
    %1339 = vmatpush1.xpose.msra.mxu0 0.0
    %1340 = vmatprep.subr.mxu0 0.0
    %1341 = vmatpush1.xpose.msra.mxu0 0.0
    %1342 = vmatprep.subr.mxu0 0.0
    %1343 = vmatpush1.xpose.msra.mxu0 0.0
    %1344 = vmatprep.subr.mxu0 0.0
    %1345 = vmatpush1.xpose.msra.mxu0 0.0
    %1346 = vmatprep.subr.mxu0 0.0
    %1347 = vmatpush1.xpose.msra.mxu0 0.0
    %1348 = vmatprep.subr.mxu0 0.0
    %1349 = vmatpush1.xpose.msra.mxu0 0.0
    %1350 = vmatprep.subr.mxu0 0.0
    %1351 = vmatpush1.xpose.msra.mxu0 0.0
    %1352 = vmatprep.subr.mxu0 0.0
    %1353 = vmatpush1.xpose.msra.mxu0 0.0
    %1354 = vmatprep.subr.mxu0 0.0
    %1355 = vmatpush1.xpose.msra.mxu0 0.0
    %1356 = vmatprep.subr.mxu0 0.0
    %1357 = vmatpush1.xpose.msra.mxu0 0.0
    %1358 = vmatprep.subr.mxu0 0.0
    %1359 = vmatpush1.xpose.msra.mxu0 0.0
    %1360 = vmatprep.subr.mxu0 0.0
    %1361 = vmatpush1.xpose.msra.mxu0 0.0
    %1362 = vmatprep.subr.mxu0 0.0
    %1363 = vmatpush1.xpose.msra.mxu0 0.0
    %1364 = vmatprep.subr.mxu0 0.0
    %1365 = vmatpush1.xpose.msra.mxu0 0.0
    %1366 = vmatprep.subr.mxu0 0.0
    %1367 = vmatpush1.xpose.msra.mxu0 0.0
    %1368 = vmatprep.subr.mxu0 0.0
    %1369 = vmatpush1.xpose.msra.mxu0 0.0
    %1370 = vmatprep.subr.mxu0 0.0
    %1371 = vmatpush1.xpose.msra.mxu0 0.0
    %1372 = vmatprep.subr.mxu0 0.0
    %1373 = vmatpush1.xpose.msra.mxu0 0.0
    %1374 = vmatprep.subr.mxu0 0.0
    %1375 = vmatpush1.xpose.msra.mxu0 0.0
    %1376 = vmatprep.subr.mxu0 0.0
    %1377 = vmatpush1.xpose.msra.mxu0 0.0
    %1378 = vmatprep.subr.mxu0 0.0
    %1379 = vmatpush1.xpose.msra.mxu0 0.0
    %1380 = vmatprep.subr.mxu0 0.0
    %1381 = vmatpush1.xpose.msra.mxu0 0.0
    %1382 = vmatprep.subr.mxu0 0.0
    %1383 = vmatpush1.xpose.msra.mxu0 0.0
    %1384 = vmatprep.subr.mxu0 0.0
    %1385 = vmatpush1.xpose.msra.mxu0 0.0
    %1386 = vmatprep.subr.mxu0 0.0
    %1387 = vmatpush1.xpose.msra.mxu0 0.0
    %1388 = vmatprep.subr.mxu0 0.0
    %1389 = vmatpush1.xpose.msra.mxu0 0.0
    %1390 = vmatprep.subr.mxu0 0.0
    %1391 = vmatpush1.xpose.msra.mxu0 0.0
    %1392 = vmatprep.mubr.f32.mxu0 0.0
    %1393 = vmatmul.mubr.f32.gmra.mrb[0].mxu0 %v1324
    %v1394 = vpop.f32.mrb[0].mxu0
    %v1395 = vadd.f32 0.0, %v1394
    %v1396 = vpop.f32.mrb[0].mxu0
    %1397 = vdwg.mxu0
    %v1398 = vsel %vm149, %v1395, -inf
    %1399 = vmax.xlane.f32.xlu0 %v1398
    %v1400 = vpop.xlane.xlu0 %1399
    %v1401 = vsub.f32 %v1395, %v1400
    %v1402 = vmul.f32 %v1401, 1.442695
    %v1403 = vpow.pop %v1402
    %v1404 = vsel %vm149, %v1403, 0.0
    %1405 = vadd.xlane.f32.xlu0 %v1404
    %v1406 = vpop.xlane.xlu0 %1405
    %v1407 = vrcp.pop %v1406
    %v1408 = vmul.f32 %v1403, %v1407
    %1409 = vrot.lane.b32.xlu0 %v141, 40
    %v1410 = vpop.permute.xlu0 %1409
    %v1413 = vsel %vm149, %v1408, 0
    %1415 = vmatprep.subr.mxu0 0.0
    %1416 = vmatpush1.msra.mxu0 %v1410
    %1417 = vmatprep.subr.mxu0 0.0
    %1418 = vmatpush1.msra.mxu0 0.0
    %1419 = vmatprep.subr.mxu0 0.0
    %1420 = vmatpush1.msra.mxu0 0.0
    %1421 = vmatprep.subr.mxu0 0.0
    %1422 = vmatpush1.msra.mxu0 0.0
    %1423 = vmatprep.subr.mxu0 0.0
    %1424 = vmatpush1.msra.mxu0 0.0
    %1425 = vmatprep.subr.mxu0 0.0
    %1426 = vmatpush1.msra.mxu0 0.0
    %1427 = vmatprep.subr.mxu0 0.0
    %1428 = vmatpush1.msra.mxu0 0.0
    %1429 = vmatprep.subr.mxu0 0.0
    %1430 = vmatpush1.msra.mxu0 0.0
    %1431 = vmatprep.subr.mxu0 0.0
    %1432 = vmatpush1.msra.mxu0 0.0
    %1433 = vmatprep.subr.mxu0 0.0
    %1434 = vmatpush1.msra.mxu0 0.0
    %1435 = vmatprep.subr.mxu0 0.0
    %1436 = vmatpush1.msra.mxu0 0.0
    %1437 = vmatprep.subr.mxu0 0.0
    %1438 = vmatpush1.msra.mxu0 0.0
    %1439 = vmatprep.subr.mxu0 0.0
    %1440 = vmatpush1.msra.mxu0 0.0
    %1441 = vmatprep.subr.mxu0 0.0
    %1442 = vmatpush1.msra.mxu0 0.0
    %1443 = vmatprep.subr.mxu0 0.0
    %1444 = vmatpush1.msra.mxu0 0.0
    %1445 = vmatprep.subr.mxu0 0.0
    %1446 = vmatpush1.msra.mxu0 0.0
    %1447 = vmatprep.subr.mxu0 0.0
    %1448 = vmatpush1.msra.mxu0 0.0
    %1449 = vmatprep.subr.mxu0 0.0
    %1450 = vmatpush1.msra.mxu0 0.0
    %1451 = vmatprep.subr.mxu0 0.0
    %1452 = vmatpush1.msra.mxu0 0.0
    %1453 = vmatprep.subr.mxu0 0.0
    %1454 = vmatpush1.msra.mxu0 0.0
    %1455 = vmatprep.subr.mxu0 0.0
    %1456 = vmatpush1.msra.mxu0 0.0
    %1457 = vmatprep.subr.mxu0 0.0
    %1458 = vmatpush1.msra.mxu0 0.0
    %1459 = vmatprep.subr.mxu0 0.0
    %1460 = vmatpush1.msra.mxu0 0.0
    %1461 = vmatprep.subr.mxu0 0.0
    %1462 = vmatpush1.msra.mxu0 0.0
    %1463 = vmatprep.subr.mxu0 0.0
    %1464 = vmatpush1.msra.mxu0 0.0
    %1465 = vmatprep.subr.mxu0 0.0
    %1466 = vmatpush1.msra.mxu0 0.0
    %1467 = vmatprep.subr.mxu0 0.0
    %1468 = vmatpush1.msra.mxu0 0.0
    %1469 = vmatprep.subr.mxu0 0.0
    %1470 = vmatpush1.msra.mxu0 0.0
    %1471 = vmatprep.subr.mxu0 0.0
    %1472 = vmatpush1.msra.mxu0 0.0
    %1473 = vmatprep.subr.mxu0 0.0
    %1474 = vmatpush1.msra.mxu0 0.0
    %1475 = vmatprep.subr.mxu0 0.0
    %1476 = vmatpush1.msra.mxu0 0.0
    %1477 = vmatprep.subr.mxu0 0.0
    %1478 = vmatpush1.msra.mxu0 0.0
    %1479 = vmatprep.mubr.f32.mxu0 0.0
    %1480 = vmatmul.mubr.f32.gmra.mrb[0].mxu0 %v1413
    %v1481 = vpop.f32.mrb[0].mxu0
    %v1482 = vadd.f32 0.0, %v1481
    %v1483 = vpop.f32.mrb[0].mxu0
    %1484 = vdwg.mxu0
    %1486 = vrot.lane.b32.xlu0 %v1152, 8
    %v1487 = vpop.permute.xlu0 %1486
    %1490 = vrot.lane.b32.xlu0 %v1317, 16
    %v1491 = vpop.permute.xlu0 %1490
    %1494 = vrot.lane.b32.xlu0 %v1482, 24
    %v1495 = vpop.permute.xlu0 %1494
    %v1497 = vsel %vm149, %v987, %v1487
    %v1498 = vsel %vm820, %v1497, %v1491
    %v1499 = vsel %vm822, %v1498, %v1495
    %s1500 = scalar_lea.vmem [#allocation2], 8
    %1501 = vst.msk [vmem:[%s1500] sm:$0xff] %vm26, %v1499
    // Predicated region
    $region10: #{tpu_custom_call.1} parent=1 // pred_check
      _
    $region11: #{tpu_custom_call.1} parent=1 // pred_check_branch
      %1503 = sbr.rel (0) target = $region13
    $region12: #{tpu_custom_call.1} parent=1 // pred_region
      %s1505 = ssub.s32 256, 256
      %1506 = vsyncadd [#allocation3], %s1505
      %s1507 = sshll.u32 [#allocation2], 4
      %s1508 = int_to_ptr.vmem [resolvable:$true] %s1507
      %1513 = dma.vmem_to_hbm [thread:$0]  %s1508, 256, %s2, [#allocation3], 128, 128, 8
    $region13: #{tpu_custom_call.1} parent=1 // pred_fallthru
      _
    // Predicated region
    $region14: #{tpu_custom_call.1} parent=1 // pred_check
      _
    $region15: #{tpu_custom_call.1} parent=1 // pred_check_branch
      %1515 = sbr.rel (0) target = $region17
    $region16: #{tpu_custom_call.1} parent=1 // pred_region
      %1516 = dma.done [#allocation3], 256
    $region17: #{tpu_custom_call.1} parent=1 // pred_fallthru
      _
    %1517 = vsyncpa [#allocation3], 1

</llo_original>
